<compile_context>
chip_gen: v7x
topology: tpu7x:2x2x1
jax: 0.10.0
libtpu: 0.0.40
codegen_flags: <defaults>
</compile_context>

<pallas_src>
import jax
import jax.numpy as jnp
from jax.experimental import pallas as pl
from jax.experimental.pallas import tpu as pltpu


def _network_kernel(x_ref, w1_ref, b1_ref, w2_ref, o_ref):
    """One grid step: `nb_tile` independent batches.

    x_ref : (nb_tile, B, num_inputs)   f32   (streamed; cast to bf16 in-kernel)
    w1_ref: (num_inputs, hidden)       bf16  (resident across the whole grid)
    b1_ref: (1, hidden)                f32   (resident)
    w2_ref: (hidden, num_actions)      bf16  (resident)
    o_ref : (nb_tile, B, num_actions)  f32
    """
    nb_t, bsz, k = x_ref.shape

    # Layout-preserving merge of the two leading (row) dims; last dim unchanged.
    # f32 -> bf16 cast happens here on the VPU (hides under the MXU), instead of as a
    # separate un-hidden XLA pass in the wrapper.
    x = x_ref[...].reshape(nb_t * bsz, k).astype(jnp.bfloat16)

    # MXU matmuls with bf16 operands / f32 accumulation; elementwise math stays f32
    # (v5e has no bf16 VPU/EUP, so we never do bf16 vector arithmetic).
    h = jnp.dot(x, w1_ref[...], preferred_element_type=jnp.float32)
    h = jnp.maximum(h + b1_ref[...], 0.0)                          # ReLU (VPU, f32)
    logits = jnp.dot(h.astype(w2_ref.dtype), w2_ref[...],
                     preferred_element_type=jnp.float32)           # (rows, num_actions)

    # Split back into (nb_tile, B, num_actions); last dim unchanged -> layout-preserving.
    l3 = logits.reshape(nb_t, bsz, -1)

    # Numerically-stable softmax over dim=0 of each (B, num_actions) batch
    # (== F.softmax(..., dim=0) in the PyTorch module). b2 was dropped: constant per column,
    # cancels exactly under this softmax.
    m = jnp.max(l3, axis=1, keepdims=True)
    e = jnp.exp(l3 - m)
    s = jnp.sum(e, axis=1, keepdims=True)
    # Exact divide: divisor is only (nb_tile, 1, num_actions), so the cost is negligible and
    # every column sums to 1 at f32 accuracy (vs ~1e-3 with pl.reciprocal(approx=True)).
    y = e / s

    o_ref[...] = y.astype(o_ref.dtype)


def prepare_network_params(w1, b1, w2, b2=None):
    """One-time parameter prep (hoisted out of the per-call path).

    w1: (num_inputs, hidden)  b1: (hidden,) or (1, hidden)  w2: (hidden, num_actions)
    b2 is accepted for API parity but unused: it cancels exactly under softmax(dim=0).
    """
    del b2  # Exact only because softmax is over dim=0 within each batch.
    hid = w1.shape[1]
    return (
        w1.astype(jnp.bfloat16),
        jnp.asarray(b1, jnp.float32).reshape(1, hid),
        w2.astype(jnp.bfloat16),
    )


def _tc_splits():
    """Best-effort TensorCores-per-device: v7x has 2, v5e/v6e have 1."""
    try:
        kind = jax.devices()[0].device_kind.lower()
        if "v7" in kind:
            return 2
    except Exception:  # pragma: no cover - any query failure -> conservative single step
        pass
    return 1


def network_forward(x_stacked, params, *, nb_tile=None):
    """Run the Network forward pass on many stacked batches in ONE pallas_call.

    x_stacked: (num_batches, B, num_inputs) f32 -> (num_batches, B, num_actions) f32,
    where out[i] equals the PyTorch module's forward() on x_stacked[i].
    params: output of prepare_network_params().
    nb_tile: batches per grid step. Default: all batches in one step on single-TC parts,
    a 2-way split on v7x (one step per TensorCore) when num_batches is even.
    """
    w1b, b1f, w2b = params
    nb, batch, k = x_stacked.shape
    kk, hid = w1b.shape
    hh, a = w2b.shape
    assert (kk, hh) == (k, hid) and b1f.shape == (1, hid)

    if nb_tile is None:
        splits = _tc_splits()
        nb_tile = nb // splits if (splits > 1 and nb % splits == 0) else nb
    else:
        # Choose the largest divisor of nb not exceeding the requested tile (handles
        # non-divisible num_batches without rejecting the call).
        nb_tile = max(1, min(nb_tile, nb))
        while nb % nb_tile:
            nb_tile -= 1
    grid_steps = nb // nb_tile

    out = pl.pallas_call(
        _network_kernel,
        out_shape=jax.ShapeDtypeStruct((nb, batch, a), jnp.float32),
        grid_spec=pltpu.PrefetchScalarGridSpec(
            num_scalar_prefetch=0,
            grid=(grid_steps,),
            in_specs=[
                # activations: a fresh (nb_tile, B, k) slab per grid step (f32, cast in-kernel)
                pl.BlockSpec((nb_tile, batch, k), lambda g: (g, 0, 0)),
                # weights/bias: same block index every step -> resident in VMEM, DMA'd once.
                pl.BlockSpec((k, hid), lambda g: (0, 0)),
                pl.BlockSpec((1, hid), lambda g: (0, 0)),
                pl.BlockSpec((hid, a), lambda g: (0, 0)),
            ],
            out_specs=pl.BlockSpec((nb_tile, batch, a), lambda g: (g, 0, 0)),
        ),
        compiler_params=pltpu.CompilerParams(
            # Independent stacked batches: disjoint output blocks, safe to shard the grid
            # across TensorCores when grid_steps > 1 (v7x). On v5e/v6e grid is (1,).
            dimension_semantics=("parallel",),
        ),
    )(x_stacked.astype(jnp.float32), w1b, b1f, w2b)
    return out


if __name__ == "__main__":
    # Small shapes consistent with the module: num_inputs=32, hidden=64, num_actions=4,
    # per-call batch B=8, with 64 independent batches stacked into a single pallas_call.
    NB, B, num_inputs, hidden_size, num_actions = 64, 8, 32, 64, 4

    key = jax.random.PRNGKey(0)
    kx, k1, k2, k3, k4 = jax.random.split(key, 5)

    # Deterministic parameter init (PyTorch Linear-style uniform bounds).
    bound1 = 1.0 / (num_inputs ** 0.5)
    bound2 = 1.0 / (hidden_size ** 0.5)
    w1 = jax.random.uniform(k1, (num_inputs, hidden_size), jnp.float32, -bound1, bound1)
    b1 = jax.random.uniform(k2, (1, hidden_size), jnp.float32, -bound1, bound1)
    w2 = jax.random.uniform(k3, (hidden_size, num_actions), jnp.float32, -bound2, bound2)
    b2 = jax.random.uniform(k4, (1, num_actions), jnp.float32, -bound2, bound2)

    x = jax.random.normal(kx, (NB, B, num_inputs), jnp.float32)

    params = prepare_network_params(w1, b1, w2, b2)   # hoisted casts: done once, not per call
    y = network_forward(x, params)
    jax.block_until_ready(y)
    assert y.shape == (NB, B, num_actions)

    # Reference 1: same bf16-operand / f32-accumulate math in plain JAX.
    xb = x.reshape(NB * B, num_inputs).astype(jnp.bfloat16)
    h_ref = jnp.maximum(
        jnp.dot(xb, w1.astype(jnp.bfloat16), preferred_element_type=jnp.float32) + b1, 0.0)
    logits_ref = jnp.dot(h_ref.astype(jnp.bfloat16), w2.astype(jnp.bfloat16),
                         preferred_element_type=jnp.float32).reshape(NB, B, num_actions)
    y_ref = jax.nn.softmax(logits_ref, axis=1)
    assert jnp.allclose(y, y_ref, atol=2e-2), float(jnp.max(jnp.abs(y - y_ref)))

    # Reference 2: the original module's math in full f32, *including* b2
    # (b2 cancels under softmax(dim=0), so dropping it in the kernel is exact).
    h32 = jnp.maximum(jnp.einsum("nbk,kh->nbh", x, w1) + b1, 0.0)
    logits32 = jnp.einsum("nbh,ha->nba", h32, w2) + b2
    y_ref32 = jax.nn.softmax(logits32, axis=1)
    assert jnp.allclose(y, y_ref32, atol=5e-2), float(jnp.max(jnp.abs(y - y_ref32)))

    # Softmax over dim=0 of each stacked batch -> every column of every batch sums to 1
    # (exact divide in-kernel, so this holds to f32 accuracy).
    assert jnp.allclose(jnp.sum(y, axis=1), jnp.ones((NB, num_actions)), atol=1e-5)

    print("KERNEL_OK")
</pallas_src>

<mosaic_0001>
module attributes {stable_mosaic.version = 11 : i64} {
  func.func @_network_kernel(%arg0: i32, %arg1: memref<64x8x32xf32, #tpu.memory_space<vmem>>, %arg2: memref<32x64xbf16, #tpu.memory_space<vmem>>, %arg3: memref<1x64xf32, #tpu.memory_space<vmem>>, %arg4: memref<64x4xbf16, #tpu.memory_space<vmem>>, %arg5: memref<64x8x4xf32, #tpu.memory_space<vmem>>) attributes {dimension_semantics = [#tpu.dimension_semantics<parallel>], iteration_bounds = array<i64: 1>, scalar_prefetch = 0 : i64, scratch_operands = 0 : i64, tpu.core_type = #tpu.core_type<tc>, window_params = [{transform_indices = @transform_0, window_bounds = array<i64: 64, 8, 32>}, {pipeline_mode = #tpu.pipeline_mode<synchronous>, transform_indices = @transform_1, window_bounds = array<i64: 32, 64>}, {pipeline_mode = #tpu.pipeline_mode<synchronous>, transform_indices = @transform_2, window_bounds = array<i64: 1, 64>}, {pipeline_mode = #tpu.pipeline_mode<synchronous>, transform_indices = @transform_3, window_bounds = array<i64: 64, 4>}, {transform_indices = @transform_4, window_bounds = array<i64: 64, 8, 4>}]} {
    %c0 = arith.constant 0 : index
    %c0_0 = arith.constant 0 : index
    %c0_1 = arith.constant 0 : index
    %0 = vector.load %arg1[%c0, %c0_0, %c0_1] : memref<64x8x32xf32, #tpu.memory_space<vmem>>, vector<64x8x32xf32>
    %1 = vector.shape_cast %0 : vector<64x8x32xf32> to vector<512x32xf32>
    %2 = arith.truncf %1 : vector<512x32xf32> to vector<512x32xbf16>
    %c0_2 = arith.constant 0 : index
    %c0_3 = arith.constant 0 : index
    %3 = vector.load %arg2[%c0_2, %c0_3] : memref<32x64xbf16, #tpu.memory_space<vmem>>, vector<32x64xbf16>
    %cst = arith.constant dense<0.000000e+00> : vector<512x64xf32>
    %4 = tpu.matmul %2, %3, %cst {dimension_numbers = #tpu.dot_dimension_numbers<[1], [0], [0], [1], [0, 0, 1, 1], [], []>} : vector<512x32xbf16>, vector<32x64xbf16>, vector<512x64xf32> -> vector<512x64xf32>
    %c0_4 = arith.constant 0 : index
    %c0_5 = arith.constant 0 : index
    %5 = vector.load %arg3[%c0_4, %c0_5] : memref<1x64xf32, #tpu.memory_space<vmem>>, vector<1x64xf32>
    %6 = vector.broadcast %5 : vector<1x64xf32> to vector<512x64xf32>
    %7 = arith.addf %4, %6 : vector<512x64xf32>
    %cst_6 = arith.constant 0.000000e+00 : f32
    %8 = vector.broadcast %cst_6 : f32 to vector<512x64xf32>
    %9 = arith.maximumf %7, %8 : vector<512x64xf32>
    %10 = arith.truncf %9 : vector<512x64xf32> to vector<512x64xbf16>
    %c0_7 = arith.constant 0 : index
    %c0_8 = arith.constant 0 : index
    %11 = vector.load %arg4[%c0_7, %c0_8] : memref<64x4xbf16, #tpu.memory_space<vmem>>, vector<64x4xbf16>
    %cst_9 = arith.constant dense<0.000000e+00> : vector<512x4xf32>
    %12 = tpu.matmul %10, %11, %cst_9 {dimension_numbers = #tpu.dot_dimension_numbers<[1], [0], [0], [1], [0, 0, 1, 1], [], []>} : vector<512x64xbf16>, vector<64x4xbf16>, vector<512x4xf32> -> vector<512x4xf32>
    %13 = vector.shape_cast %12 : vector<512x4xf32> to vector<64x8x4xf32>
    %cst_10 = arith.constant dense<0xFF800000> : vector<64x4xf32>
    %14 = vector.multi_reduction <maximumf>, %13, %cst_10 [1] : vector<64x8x4xf32> to vector<64x4xf32>
    %15 = vector.shape_cast %14 : vector<64x4xf32> to vector<64x1x4xf32>
    %16 = vector.broadcast %15 : vector<64x1x4xf32> to vector<64x8x4xf32>
    %17 = arith.subf %13, %16 : vector<64x8x4xf32>
    %18 = math.exp %17 : vector<64x8x4xf32>
    %cst_11 = arith.constant dense<0.000000e+00> : vector<64x4xf32>
    %19 = vector.multi_reduction <add>, %18, %cst_11 [1] : vector<64x8x4xf32> to vector<64x4xf32>
    %20 = vector.shape_cast %19 : vector<64x4xf32> to vector<64x1x4xf32>
    %21 = vector.broadcast %20 : vector<64x1x4xf32> to vector<64x8x4xf32>
    %22 = arith.divf %18, %21 : vector<64x8x4xf32>
    %c0_12 = arith.constant 0 : index
    %c0_13 = arith.constant 0 : index
    %c0_14 = arith.constant 0 : index
    %23 = vector.load %arg5[%c0_12, %c0_13, %c0_14] : memref<64x8x4xf32, #tpu.memory_space<vmem>>, vector<64x8x4xf32>
    tpu.vector_store %arg5[%c0_12, %c0_13, %c0_14], %22 {strides = array<i32>} : memref<64x8x4xf32, #tpu.memory_space<vmem>>, vector<64x8x4xf32>,
    return
  }
  func.func @transform_0(%arg0: i32) -> (i32, i32, i32) {
    %c0_i32 = arith.constant 0 : i32
    %c0_i32_0 = arith.constant 0 : i32
    %c0_i32_1 = arith.constant 0 : i32
    return %arg0, %c0_i32, %c0_i32_0 : i32, i32, i32
  }
  func.func @transform_1(%arg0: i32) -> (i32, i32) {
    %c0_i32 = arith.constant 0 : i32
    %c0_i32_0 = arith.constant 0 : i32
    %c0_i32_1 = arith.constant 0 : i32
    return %c0_i32, %c0_i32_0 : i32, i32
  }
  func.func @transform_2(%arg0: i32) -> (i32, i32) {
    %c0_i32 = arith.constant 0 : i32
    %c0_i32_0 = arith.constant 0 : i32
    %c0_i32_1 = arith.constant 0 : i32
    return %c0_i32, %c0_i32_0 : i32, i32
  }
  func.func @transform_3(%arg0: i32) -> (i32, i32) {
    %c0_i32 = arith.constant 0 : i32
    %c0_i32_0 = arith.constant 0 : i32
    %c0_i32_1 = arith.constant 0 : i32
    return %c0_i32, %c0_i32_0 : i32, i32
  }
  func.func @transform_4(%arg0: i32) -> (i32, i32, i32) {
    %c0_i32 = arith.constant 0 : i32
    %c0_i32_0 = arith.constant 0 : i32
    %c0_i32_1 = arith.constant 0 : i32
    return %arg0, %c0_i32, %c0_i32_0 : i32, i32, i32
  }
}

</mosaic_0001>

<llo_original>
// kernel: tpu_custom_call.1
$region0: #{tpu_custom_call.1}
  #allocation0 [shape = 'u32[]', space=smem, size = 0x4, offset = 0x4, fixed_abs, tag = 'smem constant byte address 0x4 - core index']
  #allocation1 [shape = 'u32[144,128]{1,0:T(1,128)}', space=vmem, size = 0x12000, scoped, tag = 'internal scratch']
  %s0 = inlined_call_operand.vmem [shape: f32[64,8,32], index: 0, kind: input, shape index: {}]
  %s1 = inlined_call_operand.vmem [shape: bf16[32,64], index: 1, kind: input, shape index: {}]
  %s2 = inlined_call_operand.vmem [shape: f32[1,64], index: 2, kind: input, shape index: {}]
  %s3 = inlined_call_operand.vmem [shape: bf16[64,4], index: 3, kind: input, shape index: {}]
  %s4 = inlined_call_operand.vmem [shape: f32[64,8,4], index: 4, kind: output, shape index: {}]
  %s5 = sld [smem:[#allocation0]]
  $region26: #{tpu_custom_call.1} parent=0
    _
  %s7 = ssub.s32 1, %s5
  %s8 = scalar_select 0, %s7, %s5
  // Predicated region
  $region2: #{tpu_custom_call.1} parent=0 // pred_check
    _
  $region3: #{tpu_custom_call.1} parent=0 // pred_check_branch
    %10 = sbr.rel (0) target = $region5
  $region4: #{tpu_custom_call.1} parent=0 // pred_region
    _
  $region5: #{tpu_custom_call.1} parent=0 // pred_fallthru
    _
  // Predicated region
  $region6: #{tpu_custom_call.1} parent=0 // pred_check
    _
  $region7: #{tpu_custom_call.1} parent=0 // pred_check_branch
    %12 = sbr.rel (0) target = $region9
  $region8: #{tpu_custom_call.1} parent=0 // pred_region
    _
  $region9: #{tpu_custom_call.1} parent=0 // pred_fallthru
    _
  // Predicated region
  $region10: #{tpu_custom_call.1} parent=0 // pred_check
    _
  $region11: #{tpu_custom_call.1} parent=0 // pred_check_branch
    %14 = sbr.rel (0) target = $region13
  $region12: #{tpu_custom_call.1} parent=0 // pred_region
    _
  $region13: #{tpu_custom_call.1} parent=0 // pred_fallthru
    _
  // Predicated region
  $region14: #{tpu_custom_call.1} parent=0 // pred_check
    _
  $region15: #{tpu_custom_call.1} parent=0 // pred_check_branch
    %16 = sbr.rel (0) target = $region17
  $region16: #{tpu_custom_call.1} parent=0 // pred_region
    _
  $region17: #{tpu_custom_call.1} parent=0 // pred_fallthru
    _
  %v18 = vld [vmem:[%s0] sm:$0xff]
  %v19 = vld [vmem:[%s0 + $0x8] sm:$0xff]
  %v20 = vld [vmem:[%s0 + $0x10] sm:$0xff]
  %v21 = vld [vmem:[%s0 + $0x18] sm:$0xff]
  %v22 = vld [vmem:[%s0 + $0x20] sm:$0xff]
  %v23 = vld [vmem:[%s0 + $0x28] sm:$0xff]
  %v24 = vld [vmem:[%s0 + $0x30] sm:$0xff]
  %v25 = vld [vmem:[%s0 + $0x38] sm:$0xff]
  %v26 = vld [vmem:[%s0 + $0x40] sm:$0xff]
  %v27 = vld [vmem:[%s0 + $0x48] sm:$0xff]
  %v28 = vld [vmem:[%s0 + $0x50] sm:$0xff]
  %v29 = vld [vmem:[%s0 + $0x58] sm:$0xff]
  %v30 = vld [vmem:[%s0 + $0x60] sm:$0xff]
  %v31 = vld [vmem:[%s0 + $0x68] sm:$0xff]
  %v32 = vld [vmem:[%s0 + $0x70] sm:$0xff]
  %v33 = vld [vmem:[%s0 + $0x78] sm:$0xff]
  %v34 = vld [vmem:[%s0 + $0x80] sm:$0xff]
  %v35 = vld [vmem:[%s0 + $0x88] sm:$0xff]
  %v36 = vld [vmem:[%s0 + $0x90] sm:$0xff]
  %v37 = vld [vmem:[%s0 + $0x98] sm:$0xff]
  %v38 = vld [vmem:[%s0 + $0xa0] sm:$0xff]
  %v39 = vld [vmem:[%s0 + $0xa8] sm:$0xff]
  %v40 = vld [vmem:[%s0 + $0xb0] sm:$0xff]
  %v41 = vld [vmem:[%s0 + $0xb8] sm:$0xff]
  %v42 = vld [vmem:[%s0 + $0xc0] sm:$0xff]
  %v43 = vld [vmem:[%s0 + $0xc8] sm:$0xff]
  %v44 = vld [vmem:[%s0 + $0xd0] sm:$0xff]
  %v45 = vld [vmem:[%s0 + $0xd8] sm:$0xff]
  %v46 = vld [vmem:[%s0 + $0xe0] sm:$0xff]
  %v47 = vld [vmem:[%s0 + $0xe8] sm:$0xff]
  %v48 = vld [vmem:[%s0 + $0xf0] sm:$0xff]
  %v49 = vld [vmem:[%s0 + $0xf8] sm:$0xff]
  %v50 = vld [vmem:[%s0 + $0x100] sm:$0xff]
  %v51 = vld [vmem:[%s0 + $0x108] sm:$0xff]
  %v52 = vld [vmem:[%s0 + $0x110] sm:$0xff]
  %v53 = vld [vmem:[%s0 + $0x118] sm:$0xff]
  %v54 = vld [vmem:[%s0 + $0x120] sm:$0xff]
  %v55 = vld [vmem:[%s0 + $0x128] sm:$0xff]
  %v56 = vld [vmem:[%s0 + $0x130] sm:$0xff]
  %v57 = vld [vmem:[%s0 + $0x138] sm:$0xff]
  %v58 = vld [vmem:[%s0 + $0x140] sm:$0xff]
  %v59 = vld [vmem:[%s0 + $0x148] sm:$0xff]
  %v60 = vld [vmem:[%s0 + $0x150] sm:$0xff]
  %v61 = vld [vmem:[%s0 + $0x158] sm:$0xff]
  %v62 = vld [vmem:[%s0 + $0x160] sm:$0xff]
  %v63 = vld [vmem:[%s0 + $0x168] sm:$0xff]
  %v64 = vld [vmem:[%s0 + $0x170] sm:$0xff]
  %v65 = vld [vmem:[%s0 + $0x178] sm:$0xff]
  %v66 = vld [vmem:[%s0 + $0x180] sm:$0xff]
  %v67 = vld [vmem:[%s0 + $0x188] sm:$0xff]
  %v68 = vld [vmem:[%s0 + $0x190] sm:$0xff]
  %v69 = vld [vmem:[%s0 + $0x198] sm:$0xff]
  %v70 = vld [vmem:[%s0 + $0x1a0] sm:$0xff]
  %v71 = vld [vmem:[%s0 + $0x1a8] sm:$0xff]
  %v72 = vld [vmem:[%s0 + $0x1b0] sm:$0xff]
  %v73 = vld [vmem:[%s0 + $0x1b8] sm:$0xff]
  %v74 = vld [vmem:[%s0 + $0x1c0] sm:$0xff]
  %v75 = vld [vmem:[%s0 + $0x1c8] sm:$0xff]
  %v76 = vld [vmem:[%s0 + $0x1d0] sm:$0xff]
  %v77 = vld [vmem:[%s0 + $0x1d8] sm:$0xff]
  %v78 = vld [vmem:[%s0 + $0x1e0] sm:$0xff]
  %v79 = vld [vmem:[%s0 + $0x1e8] sm:$0xff]
  %v80 = vld [vmem:[%s0 + $0x1f0] sm:$0xff]
  %v81 = vld [vmem:[%s0 + $0x1f8] sm:$0xff]
  %v82 = vpack.c.bf16 %v19, %v18
  %v83 = vpack.c.bf16 %v21, %v20
  %v84 = vpack.c.bf16 %v23, %v22
  %v85 = vpack.c.bf16 %v25, %v24
  %v86 = vpack.c.bf16 %v27, %v26
  %v87 = vpack.c.bf16 %v29, %v28
  %v88 = vpack.c.bf16 %v31, %v30
  %v89 = vpack.c.bf16 %v33, %v32
  %v90 = vpack.c.bf16 %v35, %v34
  %v91 = vpack.c.bf16 %v37, %v36
  %v92 = vpack.c.bf16 %v39, %v38
  %v93 = vpack.c.bf16 %v41, %v40
  %v94 = vpack.c.bf16 %v43, %v42
  %v95 = vpack.c.bf16 %v45, %v44
  %v96 = vpack.c.bf16 %v47, %v46
  %v97 = vpack.c.bf16 %v49, %v48
  %v98 = vpack.c.bf16 %v51, %v50
  %v99 = vpack.c.bf16 %v53, %v52
  %v100 = vpack.c.bf16 %v55, %v54
  %v101 = vpack.c.bf16 %v57, %v56
  %v102 = vpack.c.bf16 %v59, %v58
  %v103 = vpack.c.bf16 %v61, %v60
  %v104 = vpack.c.bf16 %v63, %v62
  %v105 = vpack.c.bf16 %v65, %v64
  %v106 = vpack.c.bf16 %v67, %v66
  %v107 = vpack.c.bf16 %v69, %v68
  %v108 = vpack.c.bf16 %v71, %v70
  %v109 = vpack.c.bf16 %v73, %v72
  %v110 = vpack.c.bf16 %v75, %v74
  %v111 = vpack.c.bf16 %v77, %v76
  %v112 = vpack.c.bf16 %v79, %v78
  %v113 = vpack.c.bf16 %v81, %v80
  %v114 = vld [vmem:[%s1] sm:$0xf]
  %v115 = vld [vmem:[%s1 + $0x4] sm:$0xf]
  %v116 = vld [vmem:[%s1 + $0x8] sm:$0xf]
  %v117 = vld [vmem:[%s1 + $0xc] sm:$0xf]
  %v118 = vld [vmem:[%s2] sm:$0x1]
  %v120 = vlaneseq
  %v121 = vshrl.u32 %v120, 7
  %v122 = vsub.s32 0, %v121
  %v123 = vrot.slane %v118, %v122
  %v129 = vunpack.c.l.b16 %v114
  %v130 = vunpack.c.l.b16 %v115
  %v131 = vunpack.c.l.b16 %v116
  %v132 = vunpack.c.l.b16 %v117
  %v133 = vpack.c.b16 %v130, %v129
  %v134 = vpack.c.b16 %v132, %v131
  %vm137 = vcmask 261120
  %v139 = vsel %vm137, %v82, 0
  %v142 = vsel %vm137, %v83, 0
  %v145 = vsel %vm137, %v84, 0
  %v148 = vsel %vm137, %v85, 0
  %v151 = vsel %vm137, %v86, 0
  %v154 = vsel %vm137, %v87, 0
  %v157 = vsel %vm137, %v88, 0
  %v160 = vsel %vm137, %v89, 0
  %v163 = vsel %vm137, %v90, 0
  %v166 = vsel %vm137, %v91, 0
  %v169 = vsel %vm137, %v92, 0
  %v172 = vsel %vm137, %v93, 0
  %v175 = vsel %vm137, %v94, 0
  %v178 = vsel %vm137, %v95, 0
  %v181 = vsel %vm137, %v96, 0
  %v184 = vsel %vm137, %v97, 0
  %v187 = vsel %vm137, %v98, 0
  %v190 = vsel %vm137, %v99, 0
  %v193 = vsel %vm137, %v100, 0
  %v196 = vsel %vm137, %v101, 0
  %v199 = vsel %vm137, %v102, 0
  %v202 = vsel %vm137, %v103, 0
  %v205 = vsel %vm137, %v104, 0
  %v208 = vsel %vm137, %v105, 0
  %v211 = vsel %vm137, %v106, 0
  %v214 = vsel %vm137, %v107, 0
  %v217 = vsel %vm137, %v108, 0
  %v220 = vsel %vm137, %v109, 0
  %v223 = vsel %vm137, %v110, 0
  %v226 = vsel %vm137, %v111, 0
  %v229 = vsel %vm137, %v112, 0
  %v232 = vsel %vm137, %v113, 0
  %234 = vmatprep.subr.bf16.mxu0 0
  %235 = vmatpush1.bf16.msra.mxu0 %v133
  %236 = vmatprep.subr.bf16.mxu0 0
  %237 = vmatpush1.bf16.msra.mxu0 %v134
  %238 = vmatprep.subr.bf16.mxu0 0
  %239 = vmatpush1.bf16.msra.mxu0 0
  %240 = vmatprep.subr.bf16.mxu0 0
  %241 = vmatpush1.bf16.msra.mxu0 0
  %242 = vmatprep.subr.bf16.mxu0 0
  %243 = vmatpush1.bf16.msra.mxu0 0
  %244 = vmatprep.subr.bf16.mxu0 0
  %245 = vmatpush1.bf16.msra.mxu0 0
  %246 = vmatprep.subr.bf16.mxu0 0
  %247 = vmatpush1.bf16.msra.mxu0 0
  %248 = vmatprep.subr.bf16.mxu0 0
  %249 = vmatpush1.bf16.msra.mxu0 0
  %250 = vmatprep.subr.bf16.mxu0 0
  %251 = vmatpush1.bf16.msra.mxu0 0
  %252 = vmatprep.subr.bf16.mxu0 0
  %253 = vmatpush1.bf16.msra.mxu0 0
  %254 = vmatprep.subr.bf16.mxu0 0
  %255 = vmatpush1.bf16.msra.mxu0 0
  %256 = vmatprep.subr.bf16.mxu0 0
  %257 = vmatpush1.bf16.msra.mxu0 0
  %258 = vmatprep.subr.bf16.mxu0 0
  %259 = vmatpush1.bf16.msra.mxu0 0
  %260 = vmatprep.subr.bf16.mxu0 0
  %261 = vmatpush1.bf16.msra.mxu0 0
  %262 = vmatprep.subr.bf16.mxu0 0
  %263 = vmatpush1.bf16.msra.mxu0 0
  %264 = vmatprep.subr.bf16.mxu0 0
  %265 = vmatpush1.bf16.msra.mxu0 0
  %266 = vmatprep.mubr.bf16.mxu0 0
  %267 = vmatmul.mubr.bf16.gmra.mrb[0].mxu0 %v139
  %v268 = vpop.f32.mrb[0].mxu0
  %v269 = vadd.f32 %v123, %v268
  %v270 = vpop.f32.mrb[0].mxu0
  %v271 = vpop.f32.mrb[0].mxu0
  %v272 = vadd.f32 %v123, %v271
  %v273 = vpop.f32.mrb[0].mxu0
  %274 = vmatprep.mubr.bf16.mxu0 0
  %275 = vmatmul.mubr.bf16.gmra.mrb[0].mxu0 %v142
  %v276 = vpop.f32.mrb[0].mxu0
  %v277 = vadd.f32 %v123, %v276
  %v278 = vpop.f32.mrb[0].mxu0
  %v279 = vpop.f32.mrb[0].mxu0
  %v280 = vadd.f32 %v123, %v279
  %v281 = vpop.f32.mrb[0].mxu0
  %282 = vmatprep.mubr.bf16.mxu0 0
  %283 = vmatmul.mubr.bf16.gmra.mrb[0].mxu0 %v145
  %v284 = vpop.f32.mrb[0].mxu0
  %v285 = vadd.f32 %v123, %v284
  %v286 = vpop.f32.mrb[0].mxu0
  %v287 = vpop.f32.mrb[0].mxu0
  %v288 = vadd.f32 %v123, %v287
  %v289 = vpop.f32.mrb[0].mxu0
  %290 = vmatprep.mubr.bf16.mxu0 0
  %291 = vmatmul.mubr.bf16.gmra.mrb[0].mxu0 %v148
  %v292 = vpop.f32.mrb[0].mxu0
  %v293 = vadd.f32 %v123, %v292
  %v294 = vpop.f32.mrb[0].mxu0
  %v295 = vpop.f32.mrb[0].mxu0
  %v296 = vadd.f32 %v123, %v295
  %v297 = vpop.f32.mrb[0].mxu0
  %298 = vmatprep.mubr.bf16.mxu0 0
  %299 = vmatmul.mubr.bf16.gmra.mrb[0].mxu0 %v151
  %v300 = vpop.f32.mrb[0].mxu0
  %v301 = vadd.f32 %v123, %v300
  %v302 = vpop.f32.mrb[0].mxu0
  %v303 = vpop.f32.mrb[0].mxu0
  %v304 = vadd.f32 %v123, %v303
  %v305 = vpop.f32.mrb[0].mxu0
  %306 = vmatprep.mubr.bf16.mxu0 0
  %307 = vmatmul.mubr.bf16.gmra.mrb[0].mxu0 %v154
  %v308 = vpop.f32.mrb[0].mxu0
  %v309 = vadd.f32 %v123, %v308
  %v310 = vpop.f32.mrb[0].mxu0
  %v311 = vpop.f32.mrb[0].mxu0
  %v312 = vadd.f32 %v123, %v311
  %v313 = vpop.f32.mrb[0].mxu0
  %314 = vmatprep.mubr.bf16.mxu0 0
  %315 = vmatmul.mubr.bf16.gmra.mrb[0].mxu0 %v157
  %v316 = vpop.f32.mrb[0].mxu0
  %v317 = vadd.f32 %v123, %v316
  %v318 = vpop.f32.mrb[0].mxu0
  %v319 = vpop.f32.mrb[0].mxu0
  %v320 = vadd.f32 %v123, %v319
  %v321 = vpop.f32.mrb[0].mxu0
  %322 = vmatprep.mubr.bf16.mxu0 0
  %323 = vmatmul.mubr.bf16.gmra.mrb[0].mxu0 %v160
  %v324 = vpop.f32.mrb[0].mxu0
  %v325 = vadd.f32 %v123, %v324
  %v326 = vpop.f32.mrb[0].mxu0
  %v327 = vpop.f32.mrb[0].mxu0
  %v328 = vadd.f32 %v123, %v327
  %v329 = vpop.f32.mrb[0].mxu0
  %330 = vmatprep.mubr.bf16.mxu0 0
  %331 = vmatmul.mubr.bf16.gmra.mrb[0].mxu0 %v163
  %v332 = vpop.f32.mrb[0].mxu0
  %v333 = vadd.f32 %v123, %v332
  %v334 = vpop.f32.mrb[0].mxu0
  %v335 = vpop.f32.mrb[0].mxu0
  %v336 = vadd.f32 %v123, %v335
  %v337 = vpop.f32.mrb[0].mxu0
  %338 = vmatprep.mubr.bf16.mxu0 0
  %339 = vmatmul.mubr.bf16.gmra.mrb[0].mxu0 %v166
  %v340 = vpop.f32.mrb[0].mxu0
  %v341 = vadd.f32 %v123, %v340
  %v342 = vpop.f32.mrb[0].mxu0
  %v343 = vpop.f32.mrb[0].mxu0
  %v344 = vadd.f32 %v123, %v343
  %v345 = vpop.f32.mrb[0].mxu0
  %346 = vmatprep.mubr.bf16.mxu0 0
  %347 = vmatmul.mubr.bf16.gmra.mrb[0].mxu0 %v169
  %v348 = vpop.f32.mrb[0].mxu0
  %v349 = vadd.f32 %v123, %v348
  %v350 = vpop.f32.mrb[0].mxu0
  %v351 = vpop.f32.mrb[0].mxu0
  %v352 = vadd.f32 %v123, %v351
  %v353 = vpop.f32.mrb[0].mxu0
  %354 = vmatprep.mubr.bf16.mxu0 0
  %355 = vmatmul.mubr.bf16.gmra.mrb[0].mxu0 %v172
  %v356 = vpop.f32.mrb[0].mxu0
  %v357 = vadd.f32 %v123, %v356
  %v358 = vpop.f32.mrb[0].mxu0
  %v359 = vpop.f32.mrb[0].mxu0
  %v360 = vadd.f32 %v123, %v359
  %v361 = vpop.f32.mrb[0].mxu0
  %362 = vmatprep.mubr.bf16.mxu0 0
  %363 = vmatmul.mubr.bf16.gmra.mrb[0].mxu0 %v175
  %v364 = vpop.f32.mrb[0].mxu0
  %v365 = vadd.f32 %v123, %v364
  %v366 = vpop.f32.mrb[0].mxu0
  %v367 = vpop.f32.mrb[0].mxu0
  %v368 = vadd.f32 %v123, %v367
  %v369 = vpop.f32.mrb[0].mxu0
  %370 = vmatprep.mubr.bf16.mxu0 0
  %371 = vmatmul.mubr.bf16.gmra.mrb[0].mxu0 %v178
  %v372 = vpop.f32.mrb[0].mxu0
  %v373 = vadd.f32 %v123, %v372
  %v374 = vpop.f32.mrb[0].mxu0
  %v375 = vpop.f32.mrb[0].mxu0
  %v376 = vadd.f32 %v123, %v375
  %v377 = vpop.f32.mrb[0].mxu0
  %378 = vmatprep.mubr.bf16.mxu0 0
  %379 = vmatmul.mubr.bf16.gmra.mrb[0].mxu0 %v181
  %v380 = vpop.f32.mrb[0].mxu0
  %v381 = vadd.f32 %v123, %v380
  %v382 = vpop.f32.mrb[0].mxu0
  %v383 = vpop.f32.mrb[0].mxu0
  %v384 = vadd.f32 %v123, %v383
  %v385 = vpop.f32.mrb[0].mxu0
  %386 = vmatprep.mubr.bf16.mxu0 0
  %387 = vmatmul.mubr.bf16.gmra.mrb[0].mxu0 %v184
  %v388 = vpop.f32.mrb[0].mxu0
  %v389 = vadd.f32 %v123, %v388
  %v390 = vpop.f32.mrb[0].mxu0
  %v391 = vpop.f32.mrb[0].mxu0
  %v392 = vadd.f32 %v123, %v391
  %v393 = vpop.f32.mrb[0].mxu0
  %394 = vmatprep.mubr.bf16.mxu0 0
  %395 = vmatmul.mubr.bf16.gmra.mrb[0].mxu0 %v187
  %v396 = vpop.f32.mrb[0].mxu0
  %v397 = vadd.f32 %v123, %v396
  %v398 = vpop.f32.mrb[0].mxu0
  %v399 = vpop.f32.mrb[0].mxu0
  %v400 = vadd.f32 %v123, %v399
  %v401 = vpop.f32.mrb[0].mxu0
  %402 = vmatprep.mubr.bf16.mxu0 0
  %403 = vmatmul.mubr.bf16.gmra.mrb[0].mxu0 %v190
  %v404 = vpop.f32.mrb[0].mxu0
  %v405 = vadd.f32 %v123, %v404
  %v406 = vpop.f32.mrb[0].mxu0
  %v407 = vpop.f32.mrb[0].mxu0
  %v408 = vadd.f32 %v123, %v407
  %v409 = vpop.f32.mrb[0].mxu0
  %410 = vmatprep.mubr.bf16.mxu0 0
  %411 = vmatmul.mubr.bf16.gmra.mrb[0].mxu0 %v193
  %v412 = vpop.f32.mrb[0].mxu0
  %v413 = vadd.f32 %v123, %v412
  %v414 = vpop.f32.mrb[0].mxu0
  %v415 = vpop.f32.mrb[0].mxu0
  %v416 = vadd.f32 %v123, %v415
  %v417 = vpop.f32.mrb[0].mxu0
  %418 = vmatprep.mubr.bf16.mxu0 0
  %419 = vmatmul.mubr.bf16.gmra.mrb[0].mxu0 %v196
  %v420 = vpop.f32.mrb[0].mxu0
  %v421 = vadd.f32 %v123, %v420
  %v422 = vpop.f32.mrb[0].mxu0
  %v423 = vpop.f32.mrb[0].mxu0
  %v424 = vadd.f32 %v123, %v423
  %v425 = vpop.f32.mrb[0].mxu0
  %426 = vmatprep.mubr.bf16.mxu0 0
  %427 = vmatmul.mubr.bf16.gmra.mrb[0].mxu0 %v199
  %v428 = vpop.f32.mrb[0].mxu0
  %v429 = vadd.f32 %v123, %v428
  %v430 = vpop.f32.mrb[0].mxu0
  %v431 = vpop.f32.mrb[0].mxu0
  %v432 = vadd.f32 %v123, %v431
  %v433 = vpop.f32.mrb[0].mxu0
  %434 = vmatprep.mubr.bf16.mxu0 0
  %435 = vmatmul.mubr.bf16.gmra.mrb[0].mxu0 %v202
  %v436 = vpop.f32.mrb[0].mxu0
  %v437 = vadd.f32 %v123, %v436
  %v438 = vpop.f32.mrb[0].mxu0
  %v439 = vpop.f32.mrb[0].mxu0
  %v440 = vadd.f32 %v123, %v439
  %v441 = vpop.f32.mrb[0].mxu0
  %442 = vmatprep.mubr.bf16.mxu0 0
  %443 = vmatmul.mubr.bf16.gmra.mrb[0].mxu0 %v205
  %v444 = vpop.f32.mrb[0].mxu0
  %v445 = vadd.f32 %v123, %v444
  %v446 = vpop.f32.mrb[0].mxu0
  %v447 = vpop.f32.mrb[0].mxu0
  %v448 = vadd.f32 %v123, %v447
  %v449 = vpop.f32.mrb[0].mxu0
  %450 = vmatprep.mubr.bf16.mxu0 0
  %451 = vmatmul.mubr.bf16.gmra.mrb[0].mxu0 %v208
  %v452 = vpop.f32.mrb[0].mxu0
  %v453 = vadd.f32 %v123, %v452
  %v454 = vpop.f32.mrb[0].mxu0
  %v455 = vpop.f32.mrb[0].mxu0
  %v456 = vadd.f32 %v123, %v455
  %v457 = vpop.f32.mrb[0].mxu0
  %458 = vmatprep.mubr.bf16.mxu0 0
  %459 = vmatmul.mubr.bf16.gmra.mrb[0].mxu0 %v211
  %v460 = vpop.f32.mrb[0].mxu0
  %v461 = vadd.f32 %v123, %v460
  %v462 = vpop.f32.mrb[0].mxu0
  %v463 = vpop.f32.mrb[0].mxu0
  %v464 = vadd.f32 %v123, %v463
  %v465 = vpop.f32.mrb[0].mxu0
  %466 = vmatprep.mubr.bf16.mxu0 0
  %467 = vmatmul.mubr.bf16.gmra.mrb[0].mxu0 %v214
  %v468 = vpop.f32.mrb[0].mxu0
  %v469 = vadd.f32 %v123, %v468
  %v470 = vpop.f32.mrb[0].mxu0
  %v471 = vpop.f32.mrb[0].mxu0
  %v472 = vadd.f32 %v123, %v471
  %v473 = vpop.f32.mrb[0].mxu0
  %474 = vmatprep.mubr.bf16.mxu0 0
  %475 = vmatmul.mubr.bf16.gmra.mrb[0].mxu0 %v217
  %v476 = vpop.f32.mrb[0].mxu0
  %v477 = vadd.f32 %v123, %v476
  %v478 = vpop.f32.mrb[0].mxu0
  %v479 = vpop.f32.mrb[0].mxu0
  %v480 = vadd.f32 %v123, %v479
  %v481 = vpop.f32.mrb[0].mxu0
  %482 = vmatprep.mubr.bf16.mxu0 0
  %483 = vmatmul.mubr.bf16.gmra.mrb[0].mxu0 %v220
  %v484 = vpop.f32.mrb[0].mxu0
  %v485 = vadd.f32 %v123, %v484
  %v486 = vpop.f32.mrb[0].mxu0
  %v487 = vpop.f32.mrb[0].mxu0
  %v488 = vadd.f32 %v123, %v487
  %v489 = vpop.f32.mrb[0].mxu0
  %490 = vmatprep.mubr.bf16.mxu0 0
  %491 = vmatmul.mubr.bf16.gmra.mrb[0].mxu0 %v223
  %v492 = vpop.f32.mrb[0].mxu0
  %v493 = vadd.f32 %v123, %v492
  %v494 = vpop.f32.mrb[0].mxu0
  %v495 = vpop.f32.mrb[0].mxu0
  %v496 = vadd.f32 %v123, %v495
  %v497 = vpop.f32.mrb[0].mxu0
  %498 = vmatprep.mubr.bf16.mxu0 0
  %499 = vmatmul.mubr.bf16.gmra.mrb[0].mxu0 %v226
  %v500 = vpop.f32.mrb[0].mxu0
  %v501 = vadd.f32 %v123, %v500
  %v502 = vpop.f32.mrb[0].mxu0
  %v503 = vpop.f32.mrb[0].mxu0
  %v504 = vadd.f32 %v123, %v503
  %v505 = vpop.f32.mrb[0].mxu0
  %506 = vmatprep.mubr.bf16.mxu0 0
  %507 = vmatmul.mubr.bf16.gmra.mrb[0].mxu0 %v229
  %v508 = vpop.f32.mrb[0].mxu0
  %v509 = vadd.f32 %v123, %v508
  %v510 = vpop.f32.mrb[0].mxu0
  %v511 = vpop.f32.mrb[0].mxu0
  %v512 = vadd.f32 %v123, %v511
  %v513 = vpop.f32.mrb[0].mxu0
  %514 = vmatprep.mubr.bf16.mxu0 0
  %515 = vmatmul.mubr.bf16.gmra.mrb[0].mxu0 %v232
  %v516 = vpop.f32.mrb[0].mxu0
  %v517 = vadd.f32 %v123, %v516
  %v518 = vpop.f32.mrb[0].mxu0
  %v519 = vpop.f32.mrb[0].mxu0
  %v520 = vadd.f32 %v123, %v519
  %v521 = vpop.f32.mrb[0].mxu0
  %522 = vdwg.mxu0
  %v523 = vmax.f32 %v269, 0.0
  %v524 = vmax.f32 %v272, 0.0
  %v525 = vmax.f32 %v277, 0.0
  %v526 = vmax.f32 %v280, 0.0
  %v527 = vmax.f32 %v285, 0.0
  %v528 = vmax.f32 %v288, 0.0
  %v529 = vmax.f32 %v293, 0.0
  %v530 = vmax.f32 %v296, 0.0
  %v531 = vmax.f32 %v301, 0.0
  %v532 = vmax.f32 %v304, 0.0
  %v533 = vmax.f32 %v309, 0.0
  %v534 = vmax.f32 %v312, 0.0
  %v535 = vmax.f32 %v317, 0.0
  %v536 = vmax.f32 %v320, 0.0
  %v537 = vmax.f32 %v325, 0.0
  %v538 = vmax.f32 %v328, 0.0
  %v539 = vmax.f32 %v333, 0.0
  %v540 = vmax.f32 %v336, 0.0
  %v541 = vmax.f32 %v341, 0.0
  %v542 = vmax.f32 %v344, 0.0
  %v543 = vmax.f32 %v349, 0.0
  %v544 = vmax.f32 %v352, 0.0
  %v545 = vmax.f32 %v357, 0.0
  %v546 = vmax.f32 %v360, 0.0
  %v547 = vmax.f32 %v365, 0.0
  %v548 = vmax.f32 %v368, 0.0
  %v549 = vmax.f32 %v373, 0.0
  %v550 = vmax.f32 %v376, 0.0
  %v551 = vmax.f32 %v381, 0.0
  %v552 = vmax.f32 %v384, 0.0
  %v553 = vmax.f32 %v389, 0.0
  %v554 = vmax.f32 %v392, 0.0
  %v555 = vmax.f32 %v397, 0.0
  %v556 = vmax.f32 %v400, 0.0
  %v557 = vmax.f32 %v405, 0.0
  %v558 = vmax.f32 %v408, 0.0
  %v559 = vmax.f32 %v413, 0.0
  %v560 = vmax.f32 %v416, 0.0
  %v561 = vmax.f32 %v421, 0.0
  %v562 = vmax.f32 %v424, 0.0
  %v563 = vmax.f32 %v429, 0.0
  %v564 = vmax.f32 %v432, 0.0
  %v565 = vmax.f32 %v437, 0.0
  %v566 = vmax.f32 %v440, 0.0
  %v567 = vmax.f32 %v445, 0.0
  %v568 = vmax.f32 %v448, 0.0
  %v569 = vmax.f32 %v453, 0.0
  %v570 = vmax.f32 %v456, 0.0
  %v571 = vmax.f32 %v461, 0.0
  %v572 = vmax.f32 %v464, 0.0
  %v573 = vmax.f32 %v469, 0.0
  %v574 = vmax.f32 %v472, 0.0
  %v575 = vmax.f32 %v477, 0.0
  %v576 = vmax.f32 %v480, 0.0
  %v577 = vmax.f32 %v485, 0.0
  %v578 = vmax.f32 %v488, 0.0
  %v579 = vmax.f32 %v493, 0.0
  %v580 = vmax.f32 %v496, 0.0
  %v581 = vmax.f32 %v501, 0.0
  %v582 = vmax.f32 %v504, 0.0
  %v583 = vmax.f32 %v509, 0.0
  %v584 = vmax.f32 %v512, 0.0
  %v585 = vmax.f32 %v517, 0.0
  %v586 = vmax.f32 %v520, 0.0
  %v587 = vpack.c.bf16 %v524, %v523
  %v588 = vpack.c.bf16 %v526, %v525
  %v589 = vpack.c.bf16 %v528, %v527
  %v590 = vpack.c.bf16 %v530, %v529
  %v591 = vpack.c.bf16 %v532, %v531
  %v592 = vpack.c.bf16 %v534, %v533
  %v593 = vpack.c.bf16 %v536, %v535
  %v594 = vpack.c.bf16 %v538, %v537
  %v595 = vpack.c.bf16 %v540, %v539
  %v596 = vpack.c.bf16 %v542, %v541
  %v597 = vpack.c.bf16 %v544, %v543
  %v598 = vpack.c.bf16 %v546, %v545
  %v599 = vpack.c.bf16 %v548, %v547
  %v600 = vpack.c.bf16 %v550, %v549
  %v601 = vpack.c.bf16 %v552, %v551
  %v602 = vpack.c.bf16 %v554, %v553
  %v603 = vpack.c.bf16 %v556, %v555
  %v604 = vpack.c.bf16 %v558, %v557
  %v605 = vpack.c.bf16 %v560, %v559
  %v606 = vpack.c.bf16 %v562, %v561
  %v607 = vpack.c.bf16 %v564, %v563
  %v608 = vpack.c.bf16 %v566, %v565
  %v609 = vpack.c.bf16 %v568, %v567
  %v610 = vpack.c.bf16 %v570, %v569
  %v611 = vpack.c.bf16 %v572, %v571
  %v612 = vpack.c.bf16 %v574, %v573
  %v613 = vpack.c.bf16 %v576, %v575
  %v614 = vpack.c.bf16 %v578, %v577
  %v615 = vpack.c.bf16 %v580, %v579
  %v616 = vpack.c.bf16 %v582, %v581
  %v617 = vpack.c.bf16 %v584, %v583
  %v618 = vpack.c.bf16 %v586, %v585
  %v619 = vld [vmem:[%s3] sm:$0xf]
  %v620 = vld [vmem:[%s3 + $0x4] sm:$0xf]
  %v621 = vld [vmem:[%s3 + $0x8] sm:$0xf]
  %v622 = vld [vmem:[%s3 + $0xc] sm:$0xf]
  %v623 = vld [vmem:[%s3 + $0x10] sm:$0xf]
  %v624 = vld [vmem:[%s3 + $0x14] sm:$0xf]
  %v625 = vld [vmem:[%s3 + $0x18] sm:$0xf]
  %v626 = vld [vmem:[%s3 + $0x1c] sm:$0xf]
  %v635 = vunpack.c.l.b16 %v619
  %v636 = vunpack.c.l.b16 %v620
  %v637 = vunpack.c.l.b16 %v621
  %v638 = vunpack.c.l.b16 %v622
  %v639 = vunpack.c.l.b16 %v623
  %v640 = vunpack.c.l.b16 %v624
  %v641 = vunpack.c.l.b16 %v625
  %v642 = vunpack.c.l.b16 %v626
  %v643 = vpack.c.b16 %v636, %v635
  %v644 = vpack.c.b16 %v638, %v637
  %v645 = vpack.c.b16 %v640, %v639
  %v646 = vpack.c.b16 %v642, %v641
  %vm651 = vcmask 523264
  %v653 = vsel %vm651, %v587, 0
  %v656 = vsel %vm651, %v588, 0
  %v659 = vsel %vm651, %v589, 0
  %v662 = vsel %vm651, %v590, 0
  %v665 = vsel %vm651, %v591, 0
  %v668 = vsel %vm651, %v592, 0
  %v671 = vsel %vm651, %v593, 0
  %v674 = vsel %vm651, %v594, 0
  %v677 = vsel %vm651, %v595, 0
  %v680 = vsel %vm651, %v596, 0
  %v683 = vsel %vm651, %v597, 0
  %v686 = vsel %vm651, %v598, 0
  %v689 = vsel %vm651, %v599, 0
  %v692 = vsel %vm651, %v600, 0
  %v695 = vsel %vm651, %v601, 0
  %v698 = vsel %vm651, %v602, 0
  %v701 = vsel %vm651, %v603, 0
  %v704 = vsel %vm651, %v604, 0
  %v707 = vsel %vm651, %v605, 0
  %v710 = vsel %vm651, %v606, 0
  %v713 = vsel %vm651, %v607, 0
  %v716 = vsel %vm651, %v608, 0
  %v719 = vsel %vm651, %v609, 0
  %v722 = vsel %vm651, %v610, 0
  %v725 = vsel %vm651, %v611, 0
  %v728 = vsel %vm651, %v612, 0
  %v731 = vsel %vm651, %v613, 0
  %v734 = vsel %vm651, %v614, 0
  %v737 = vsel %vm651, %v615, 0
  %v740 = vsel %vm651, %v616, 0
  %v743 = vsel %vm651, %v617, 0
  %v746 = vsel %vm651, %v618, 0
  %748 = vmatprep.subr.bf16.mxu0 0
  %749 = vmatpush1.bf16.msra.mxu0 %v643
  %750 = vmatprep.subr.bf16.mxu0 0
  %751 = vmatpush1.bf16.msra.mxu0 %v644
  %752 = vmatprep.subr.bf16.mxu0 0
  %753 = vmatpush1.bf16.msra.mxu0 %v645
  %754 = vmatprep.subr.bf16.mxu0 0
  %755 = vmatpush1.bf16.msra.mxu0 %v646
  %756 = vmatprep.subr.bf16.mxu0 0
  %757 = vmatpush1.bf16.msra.mxu0 0
  %758 = vmatprep.subr.bf16.mxu0 0
  %759 = vmatpush1.bf16.msra.mxu0 0
  %760 = vmatprep.subr.bf16.mxu0 0
  %761 = vmatpush1.bf16.msra.mxu0 0
  %762 = vmatprep.subr.bf16.mxu0 0
  %763 = vmatpush1.bf16.msra.mxu0 0
  %764 = vmatprep.subr.bf16.mxu0 0
  %765 = vmatpush1.bf16.msra.mxu0 0
  %766 = vmatprep.subr.bf16.mxu0 0
  %767 = vmatpush1.bf16.msra.mxu0 0
  %768 = vmatprep.subr.bf16.mxu0 0
  %769 = vmatpush1.bf16.msra.mxu0 0
  %770 = vmatprep.subr.bf16.mxu0 0
  %771 = vmatpush1.bf16.msra.mxu0 0
  %772 = vmatprep.subr.bf16.mxu0 0
  %773 = vmatpush1.bf16.msra.mxu0 0
  %774 = vmatprep.subr.bf16.mxu0 0
  %775 = vmatpush1.bf16.msra.mxu0 0
  %776 = vmatprep.subr.bf16.mxu0 0
  %777 = vmatpush1.bf16.msra.mxu0 0
  %778 = vmatprep.subr.bf16.mxu0 0
  %779 = vmatpush1.bf16.msra.mxu0 0
  %780 = vmatprep.mubr.bf16.mxu0 0
  %781 = vmatmul.mubr.bf16.gmra.mrb[0].mxu0 %v653
  %v782 = vpop.f32.mrb[0].mxu0
  %v783 = vadd.f32 0.0, %v782
  %v784 = vpop.f32.mrb[0].mxu0
  %v785 = vpop.f32.mrb[0].mxu0
  %v786 = vadd.f32 0.0, %v785
  %v787 = vpop.f32.mrb[0].mxu0
  %788 = vmatprep.mubr.bf16.mxu0 0
  %789 = vmatmul.mubr.bf16.gmra.mrb[0].mxu0 %v656
  %v790 = vpop.f32.mrb[0].mxu0
  %v791 = vadd.f32 0.0, %v790
  %v792 = vpop.f32.mrb[0].mxu0
  %v793 = vpop.f32.mrb[0].mxu0
  %v794 = vadd.f32 0.0, %v793
  %v795 = vpop.f32.mrb[0].mxu0
  %796 = vmatprep.mubr.bf16.mxu0 0
  %797 = vmatmul.mubr.bf16.gmra.mrb[0].mxu0 %v659
  %v798 = vpop.f32.mrb[0].mxu0
  %v799 = vadd.f32 0.0, %v798
  %v800 = vpop.f32.mrb[0].mxu0
  %v801 = vpop.f32.mrb[0].mxu0
  %v802 = vadd.f32 0.0, %v801
  %v803 = vpop.f32.mrb[0].mxu0
  %804 = vmatprep.mubr.bf16.mxu0 0
  %805 = vmatmul.mubr.bf16.gmra.mrb[0].mxu0 %v662
  %v806 = vpop.f32.mrb[0].mxu0
  %v807 = vadd.f32 0.0, %v806
  %v808 = vpop.f32.mrb[0].mxu0
  %v809 = vpop.f32.mrb[0].mxu0
  %v810 = vadd.f32 0.0, %v809
  %v811 = vpop.f32.mrb[0].mxu0
  %812 = vmatprep.mubr.bf16.mxu0 0
  %813 = vmatmul.mubr.bf16.gmra.mrb[0].mxu0 %v665
  %v814 = vpop.f32.mrb[0].mxu0
  %v815 = vadd.f32 0.0, %v814
  %v816 = vpop.f32.mrb[0].mxu0
  %v817 = vpop.f32.mrb[0].mxu0
  %v818 = vadd.f32 0.0, %v817
  %v819 = vpop.f32.mrb[0].mxu0
  %820 = vmatprep.mubr.bf16.mxu0 0
  %821 = vmatmul.mubr.bf16.gmra.mrb[0].mxu0 %v668
  %v822 = vpop.f32.mrb[0].mxu0
  %v823 = vadd.f32 0.0, %v822
  %v824 = vpop.f32.mrb[0].mxu0
  %v825 = vpop.f32.mrb[0].mxu0
  %v826 = vadd.f32 0.0, %v825
  %v827 = vpop.f32.mrb[0].mxu0
  %828 = vmatprep.mubr.bf16.mxu0 0
  %829 = vmatmul.mubr.bf16.gmra.mrb[0].mxu0 %v671
  %v830 = vpop.f32.mrb[0].mxu0
  %v831 = vadd.f32 0.0, %v830
  %v832 = vpop.f32.mrb[0].mxu0
  %v833 = vpop.f32.mrb[0].mxu0
  %v834 = vadd.f32 0.0, %v833
  %v835 = vpop.f32.mrb[0].mxu0
  %836 = vmatprep.mubr.bf16.mxu0 0
  %837 = vmatmul.mubr.bf16.gmra.mrb[0].mxu0 %v674
  %v838 = vpop.f32.mrb[0].mxu0
  %v839 = vadd.f32 0.0, %v838
  %v840 = vpop.f32.mrb[0].mxu0
  %v841 = vpop.f32.mrb[0].mxu0
  %v842 = vadd.f32 0.0, %v841
  %v843 = vpop.f32.mrb[0].mxu0
  %844 = vmatprep.mubr.bf16.mxu0 0
  %845 = vmatmul.mubr.bf16.gmra.mrb[0].mxu0 %v677
  %v846 = vpop.f32.mrb[0].mxu0
  %v847 = vadd.f32 0.0, %v846
  %v848 = vpop.f32.mrb[0].mxu0
  %v849 = vpop.f32.mrb[0].mxu0
  %v850 = vadd.f32 0.0, %v849
  %v851 = vpop.f32.mrb[0].mxu0
  %852 = vmatprep.mubr.bf16.mxu0 0
  %853 = vmatmul.mubr.bf16.gmra.mrb[0].mxu0 %v680
  %v854 = vpop.f32.mrb[0].mxu0
  %v855 = vadd.f32 0.0, %v854
  %v856 = vpop.f32.mrb[0].mxu0
  %v857 = vpop.f32.mrb[0].mxu0
  %v858 = vadd.f32 0.0, %v857
  %v859 = vpop.f32.mrb[0].mxu0
  %860 = vmatprep.mubr.bf16.mxu0 0
  %861 = vmatmul.mubr.bf16.gmra.mrb[0].mxu0 %v683
  %v862 = vpop.f32.mrb[0].mxu0
  %v863 = vadd.f32 0.0, %v862
  %v864 = vpop.f32.mrb[0].mxu0
  %v865 = vpop.f32.mrb[0].mxu0
  %v866 = vadd.f32 0.0, %v865
  %v867 = vpop.f32.mrb[0].mxu0
  %868 = vmatprep.mubr.bf16.mxu0 0
  %869 = vmatmul.mubr.bf16.gmra.mrb[0].mxu0 %v686
  %v870 = vpop.f32.mrb[0].mxu0
  %v871 = vadd.f32 0.0, %v870
  %v872 = vpop.f32.mrb[0].mxu0
  %v873 = vpop.f32.mrb[0].mxu0
  %v874 = vadd.f32 0.0, %v873
  %v875 = vpop.f32.mrb[0].mxu0
  %876 = vmatprep.mubr.bf16.mxu0 0
  %877 = vmatmul.mubr.bf16.gmra.mrb[0].mxu0 %v689
  %v878 = vpop.f32.mrb[0].mxu0
  %v879 = vadd.f32 0.0, %v878
  %v880 = vpop.f32.mrb[0].mxu0
  %v881 = vpop.f32.mrb[0].mxu0
  %v882 = vadd.f32 0.0, %v881
  %v883 = vpop.f32.mrb[0].mxu0
  %884 = vmatprep.mubr.bf16.mxu0 0
  %885 = vmatmul.mubr.bf16.gmra.mrb[0].mxu0 %v692
  %v886 = vpop.f32.mrb[0].mxu0
  %v887 = vadd.f32 0.0, %v886
  %v888 = vpop.f32.mrb[0].mxu0
  %v889 = vpop.f32.mrb[0].mxu0
  %v890 = vadd.f32 0.0, %v889
  %v891 = vpop.f32.mrb[0].mxu0
  %892 = vmatprep.mubr.bf16.mxu0 0
  %893 = vmatmul.mubr.bf16.gmra.mrb[0].mxu0 %v695
  %v894 = vpop.f32.mrb[0].mxu0
  %v895 = vadd.f32 0.0, %v894
  %v896 = vpop.f32.mrb[0].mxu0
  %v897 = vpop.f32.mrb[0].mxu0
  %v898 = vadd.f32 0.0, %v897
  %v899 = vpop.f32.mrb[0].mxu0
  %900 = vmatprep.mubr.bf16.mxu0 0
  %901 = vmatmul.mubr.bf16.gmra.mrb[0].mxu0 %v698
  %v902 = vpop.f32.mrb[0].mxu0
  %v903 = vadd.f32 0.0, %v902
  %v904 = vpop.f32.mrb[0].mxu0
  %v905 = vpop.f32.mrb[0].mxu0
  %v906 = vadd.f32 0.0, %v905
  %v907 = vpop.f32.mrb[0].mxu0
  %908 = vmatprep.mubr.bf16.mxu0 0
  %909 = vmatmul.mubr.bf16.gmra.mrb[0].mxu0 %v701
  %v910 = vpop.f32.mrb[0].mxu0
  %v911 = vadd.f32 0.0, %v910
  %v912 = vpop.f32.mrb[0].mxu0
  %v913 = vpop.f32.mrb[0].mxu0
  %v914 = vadd.f32 0.0, %v913
  %v915 = vpop.f32.mrb[0].mxu0
  %916 = vmatprep.mubr.bf16.mxu0 0
  %917 = vmatmul.mubr.bf16.gmra.mrb[0].mxu0 %v704
  %v918 = vpop.f32.mrb[0].mxu0
  %v919 = vadd.f32 0.0, %v918
  %v920 = vpop.f32.mrb[0].mxu0
  %v921 = vpop.f32.mrb[0].mxu0
  %v922 = vadd.f32 0.0, %v921
  %v923 = vpop.f32.mrb[0].mxu0
  %924 = vmatprep.mubr.bf16.mxu0 0
  %925 = vmatmul.mubr.bf16.gmra.mrb[0].mxu0 %v707
  %v926 = vpop.f32.mrb[0].mxu0
  %v927 = vadd.f32 0.0, %v926
  %v928 = vpop.f32.mrb[0].mxu0
  %v929 = vpop.f32.mrb[0].mxu0
  %v930 = vadd.f32 0.0, %v929
  %v931 = vpop.f32.mrb[0].mxu0
  %932 = vmatprep.mubr.bf16.mxu0 0
  %933 = vmatmul.mubr.bf16.gmra.mrb[0].mxu0 %v710
  %v934 = vpop.f32.mrb[0].mxu0
  %v935 = vadd.f32 0.0, %v934
  %v936 = vpop.f32.mrb[0].mxu0
  %v937 = vpop.f32.mrb[0].mxu0
  %v938 = vadd.f32 0.0, %v937
  %v939 = vpop.f32.mrb[0].mxu0
  %940 = vmatprep.mubr.bf16.mxu0 0
  %941 = vmatmul.mubr.bf16.gmra.mrb[0].mxu0 %v713
  %v942 = vpop.f32.mrb[0].mxu0
  %v943 = vadd.f32 0.0, %v942
  %v944 = vpop.f32.mrb[0].mxu0
  %v945 = vpop.f32.mrb[0].mxu0
  %v946 = vadd.f32 0.0, %v945
  %v947 = vpop.f32.mrb[0].mxu0
  %948 = vmatprep.mubr.bf16.mxu0 0
  %949 = vmatmul.mubr.bf16.gmra.mrb[0].mxu0 %v716
  %v950 = vpop.f32.mrb[0].mxu0
  %v951 = vadd.f32 0.0, %v950
  %v952 = vpop.f32.mrb[0].mxu0
  %v953 = vpop.f32.mrb[0].mxu0
  %v954 = vadd.f32 0.0, %v953
  %v955 = vpop.f32.mrb[0].mxu0
  %956 = vmatprep.mubr.bf16.mxu0 0
  %957 = vmatmul.mubr.bf16.gmra.mrb[0].mxu0 %v719
  %v958 = vpop.f32.mrb[0].mxu0
  %v959 = vadd.f32 0.0, %v958
  %v960 = vpop.f32.mrb[0].mxu0
  %v961 = vpop.f32.mrb[0].mxu0
  %v962 = vadd.f32 0.0, %v961
  %v963 = vpop.f32.mrb[0].mxu0
  %964 = vmatprep.mubr.bf16.mxu0 0
  %965 = vmatmul.mubr.bf16.gmra.mrb[0].mxu0 %v722
  %v966 = vpop.f32.mrb[0].mxu0
  %v967 = vadd.f32 0.0, %v966
  %v968 = vpop.f32.mrb[0].mxu0
  %v969 = vpop.f32.mrb[0].mxu0
  %v970 = vadd.f32 0.0, %v969
  %v971 = vpop.f32.mrb[0].mxu0
  %972 = vmatprep.mubr.bf16.mxu0 0
  %973 = vmatmul.mubr.bf16.gmra.mrb[0].mxu0 %v725
  %v974 = vpop.f32.mrb[0].mxu0
  %v975 = vadd.f32 0.0, %v974
  %v976 = vpop.f32.mrb[0].mxu0
  %v977 = vpop.f32.mrb[0].mxu0
  %v978 = vadd.f32 0.0, %v977
  %v979 = vpop.f32.mrb[0].mxu0
  %980 = vmatprep.mubr.bf16.mxu0 0
  %981 = vmatmul.mubr.bf16.gmra.mrb[0].mxu0 %v728
  %v982 = vpop.f32.mrb[0].mxu0
  %v983 = vadd.f32 0.0, %v982
  %v984 = vpop.f32.mrb[0].mxu0
  %v985 = vpop.f32.mrb[0].mxu0
  %v986 = vadd.f32 0.0, %v985
  %v987 = vpop.f32.mrb[0].mxu0
  %988 = vmatprep.mubr.bf16.mxu0 0
  %989 = vmatmul.mubr.bf16.gmra.mrb[0].mxu0 %v731
  %v990 = vpop.f32.mrb[0].mxu0
  %v991 = vadd.f32 0.0, %v990
  %v992 = vpop.f32.mrb[0].mxu0
  %v993 = vpop.f32.mrb[0].mxu0
  %v994 = vadd.f32 0.0, %v993
  %v995 = vpop.f32.mrb[0].mxu0
  %996 = vmatprep.mubr.bf16.mxu0 0
  %997 = vmatmul.mubr.bf16.gmra.mrb[0].mxu0 %v734
  %v998 = vpop.f32.mrb[0].mxu0
  %v999 = vadd.f32 0.0, %v998
  %v1000 = vpop.f32.mrb[0].mxu0
  %v1001 = vpop.f32.mrb[0].mxu0
  %v1002 = vadd.f32 0.0, %v1001
  %v1003 = vpop.f32.mrb[0].mxu0
  %1004 = vmatprep.mubr.bf16.mxu0 0
  %1005 = vmatmul.mubr.bf16.gmra.mrb[0].mxu0 %v737
  %v1006 = vpop.f32.mrb[0].mxu0
  %v1007 = vadd.f32 0.0, %v1006
  %v1008 = vpop.f32.mrb[0].mxu0
  %v1009 = vpop.f32.mrb[0].mxu0
  %v1010 = vadd.f32 0.0, %v1009
  %v1011 = vpop.f32.mrb[0].mxu0
  %1012 = vmatprep.mubr.bf16.mxu0 0
  %1013 = vmatmul.mubr.bf16.gmra.mrb[0].mxu0 %v740
  %v1014 = vpop.f32.mrb[0].mxu0
  %v1015 = vadd.f32 0.0, %v1014
  %v1016 = vpop.f32.mrb[0].mxu0
  %v1017 = vpop.f32.mrb[0].mxu0
  %v1018 = vadd.f32 0.0, %v1017
  %v1019 = vpop.f32.mrb[0].mxu0
  %1020 = vmatprep.mubr.bf16.mxu0 0
  %1021 = vmatmul.mubr.bf16.gmra.mrb[0].mxu0 %v743
  %v1022 = vpop.f32.mrb[0].mxu0
  %v1023 = vadd.f32 0.0, %v1022
  %v1024 = vpop.f32.mrb[0].mxu0
  %v1025 = vpop.f32.mrb[0].mxu0
  %v1026 = vadd.f32 0.0, %v1025
  %v1027 = vpop.f32.mrb[0].mxu0
  %1028 = vmatprep.mubr.bf16.mxu0 0
  %1029 = vmatmul.mubr.bf16.gmra.mrb[0].mxu0 %v746
  %v1030 = vpop.f32.mrb[0].mxu0
  %v1031 = vadd.f32 0.0, %v1030
  %v1032 = vpop.f32.mrb[0].mxu0
  %v1033 = vpop.f32.mrb[0].mxu0
  %v1034 = vadd.f32 0.0, %v1033
  %v1035 = vpop.f32.mrb[0].mxu0
  %1036 = vdwg.mxu0
  %vm1037 = vcmask 31744
  %v1038 = vsel %vm1037, %v783, -inf
  %v1039 = vrot.slane %v1038, 4
  %v1040 = vmax.f32 %v1038, %v1039
  %v1041 = vrot.slane %v1040, 2
  %v1042 = vmax.f32 %v1040, %v1041
  %v1043 = vrot.slane %v1042, 1
  %v1044 = vmax.f32 %v1042, %v1043
  %v1045 = vsel %vm1037, %v786, -inf
  %v1046 = vrot.slane %v1045, 4
  %v1047 = vmax.f32 %v1045, %v1046
  %v1048 = vrot.slane %v1047, 2
  %v1049 = vmax.f32 %v1047, %v1048
  %v1050 = vrot.slane %v1049, 1
  %v1051 = vmax.f32 %v1049, %v1050
  %v1052 = vsel %vm1037, %v791, -inf
  %v1053 = vrot.slane %v1052, 4
  %v1054 = vmax.f32 %v1052, %v1053
  %v1055 = vrot.slane %v1054, 2
  %v1056 = vmax.f32 %v1054, %v1055
  %v1057 = vrot.slane %v1056, 1
  %v1058 = vmax.f32 %v1056, %v1057
  %v1059 = vsel %vm1037, %v794, -inf
  %v1060 = vrot.slane %v1059, 4
  %v1061 = vmax.f32 %v1059, %v1060
  %v1062 = vrot.slane %v1061, 2
  %v1063 = vmax.f32 %v1061, %v1062
  %v1064 = vrot.slane %v1063, 1
  %v1065 = vmax.f32 %v1063, %v1064
  %v1066 = vsel %vm1037, %v799, -inf
  %v1067 = vrot.slane %v1066, 4
  %v1068 = vmax.f32 %v1066, %v1067
  %v1069 = vrot.slane %v1068, 2
  %v1070 = vmax.f32 %v1068, %v1069
  %v1071 = vrot.slane %v1070, 1
  %v1072 = vmax.f32 %v1070, %v1071
  %v1073 = vsel %vm1037, %v802, -inf
  %v1074 = vrot.slane %v1073, 4
  %v1075 = vmax.f32 %v1073, %v1074
  %v1076 = vrot.slane %v1075, 2
  %v1077 = vmax.f32 %v1075, %v1076
  %v1078 = vrot.slane %v1077, 1
  %v1079 = vmax.f32 %v1077, %v1078
  %v1080 = vsel %vm1037, %v807, -inf
  %v1081 = vrot.slane %v1080, 4
  %v1082 = vmax.f32 %v1080, %v1081
  %v1083 = vrot.slane %v1082, 2
  %v1084 = vmax.f32 %v1082, %v1083
  %v1085 = vrot.slane %v1084, 1
  %v1086 = vmax.f32 %v1084, %v1085
  %v1087 = vsel %vm1037, %v810, -inf
  %v1088 = vrot.slane %v1087, 4
  %v1089 = vmax.f32 %v1087, %v1088
  %v1090 = vrot.slane %v1089, 2
  %v1091 = vmax.f32 %v1089, %v1090
  %v1092 = vrot.slane %v1091, 1
  %v1093 = vmax.f32 %v1091, %v1092
  %v1094 = vsel %vm1037, %v815, -inf
  %v1095 = vrot.slane %v1094, 4
  %v1096 = vmax.f32 %v1094, %v1095
  %v1097 = vrot.slane %v1096, 2
  %v1098 = vmax.f32 %v1096, %v1097
  %v1099 = vrot.slane %v1098, 1
  %v1100 = vmax.f32 %v1098, %v1099
  %v1101 = vsel %vm1037, %v818, -inf
  %v1102 = vrot.slane %v1101, 4
  %v1103 = vmax.f32 %v1101, %v1102
  %v1104 = vrot.slane %v1103, 2
  %v1105 = vmax.f32 %v1103, %v1104
  %v1106 = vrot.slane %v1105, 1
  %v1107 = vmax.f32 %v1105, %v1106
  %v1108 = vsel %vm1037, %v823, -inf
  %v1109 = vrot.slane %v1108, 4
  %v1110 = vmax.f32 %v1108, %v1109
  %v1111 = vrot.slane %v1110, 2
  %v1112 = vmax.f32 %v1110, %v1111
  %v1113 = vrot.slane %v1112, 1
  %v1114 = vmax.f32 %v1112, %v1113
  %v1115 = vsel %vm1037, %v826, -inf
  %v1116 = vrot.slane %v1115, 4
  %v1117 = vmax.f32 %v1115, %v1116
  %v1118 = vrot.slane %v1117, 2
  %v1119 = vmax.f32 %v1117, %v1118
  %v1120 = vrot.slane %v1119, 1
  %v1121 = vmax.f32 %v1119, %v1120
  %v1122 = vsel %vm1037, %v831, -inf
  %v1123 = vrot.slane %v1122, 4
  %v1124 = vmax.f32 %v1122, %v1123
  %v1125 = vrot.slane %v1124, 2
  %v1126 = vmax.f32 %v1124, %v1125
  %v1127 = vrot.slane %v1126, 1
  %v1128 = vmax.f32 %v1126, %v1127
  %v1129 = vsel %vm1037, %v834, -inf
  %v1130 = vrot.slane %v1129, 4
  %v1131 = vmax.f32 %v1129, %v1130
  %v1132 = vrot.slane %v1131, 2
  %v1133 = vmax.f32 %v1131, %v1132
  %v1134 = vrot.slane %v1133, 1
  %v1135 = vmax.f32 %v1133, %v1134
  %v1136 = vsel %vm1037, %v839, -inf
  %v1137 = vrot.slane %v1136, 4
  %v1138 = vmax.f32 %v1136, %v1137
  %v1139 = vrot.slane %v1138, 2
  %v1140 = vmax.f32 %v1138, %v1139
  %v1141 = vrot.slane %v1140, 1
  %v1142 = vmax.f32 %v1140, %v1141
  %v1143 = vsel %vm1037, %v842, -inf
  %v1144 = vrot.slane %v1143, 4
  %v1145 = vmax.f32 %v1143, %v1144
  %v1146 = vrot.slane %v1145, 2
  %v1147 = vmax.f32 %v1145, %v1146
  %v1148 = vrot.slane %v1147, 1
  %v1149 = vmax.f32 %v1147, %v1148
  %v1150 = vsel %vm1037, %v847, -inf
  %v1151 = vrot.slane %v1150, 4
  %v1152 = vmax.f32 %v1150, %v1151
  %v1153 = vrot.slane %v1152, 2
  %v1154 = vmax.f32 %v1152, %v1153
  %v1155 = vrot.slane %v1154, 1
  %v1156 = vmax.f32 %v1154, %v1155
  %v1157 = vsel %vm1037, %v850, -inf
  %v1158 = vrot.slane %v1157, 4
  %v1159 = vmax.f32 %v1157, %v1158
  %v1160 = vrot.slane %v1159, 2
  %v1161 = vmax.f32 %v1159, %v1160
  %v1162 = vrot.slane %v1161, 1
  %v1163 = vmax.f32 %v1161, %v1162
  %v1164 = vsel %vm1037, %v855, -inf
  %v1165 = vrot.slane %v1164, 4
  %v1166 = vmax.f32 %v1164, %v1165
  %v1167 = vrot.slane %v1166, 2
  %v1168 = vmax.f32 %v1166, %v1167
  %v1169 = vrot.slane %v1168, 1
  %v1170 = vmax.f32 %v1168, %v1169
  %v1171 = vsel %vm1037, %v858, -inf
  %v1172 = vrot.slane %v1171, 4
  %v1173 = vmax.f32 %v1171, %v1172
  %v1174 = vrot.slane %v1173, 2
  %v1175 = vmax.f32 %v1173, %v1174
  %v1176 = vrot.slane %v1175, 1
  %v1177 = vmax.f32 %v1175, %v1176
  %v1178 = vsel %vm1037, %v863, -inf
  %v1179 = vrot.slane %v1178, 4
  %v1180 = vmax.f32 %v1178, %v1179
  %v1181 = vrot.slane %v1180, 2
  %v1182 = vmax.f32 %v1180, %v1181
  %v1183 = vrot.slane %v1182, 1
  %v1184 = vmax.f32 %v1182, %v1183
  %v1185 = vsel %vm1037, %v866, -inf
  %v1186 = vrot.slane %v1185, 4
  %v1187 = vmax.f32 %v1185, %v1186
  %v1188 = vrot.slane %v1187, 2
  %v1189 = vmax.f32 %v1187, %v1188
  %v1190 = vrot.slane %v1189, 1
  %v1191 = vmax.f32 %v1189, %v1190
  %v1192 = vsel %vm1037, %v871, -inf
  %v1193 = vrot.slane %v1192, 4
  %v1194 = vmax.f32 %v1192, %v1193
  %v1195 = vrot.slane %v1194, 2
  %v1196 = vmax.f32 %v1194, %v1195
  %v1197 = vrot.slane %v1196, 1
  %v1198 = vmax.f32 %v1196, %v1197
  %v1199 = vsel %vm1037, %v874, -inf
  %v1200 = vrot.slane %v1199, 4
  %v1201 = vmax.f32 %v1199, %v1200
  %v1202 = vrot.slane %v1201, 2
  %v1203 = vmax.f32 %v1201, %v1202
  %v1204 = vrot.slane %v1203, 1
  %v1205 = vmax.f32 %v1203, %v1204
  %v1206 = vsel %vm1037, %v879, -inf
  %v1207 = vrot.slane %v1206, 4
  %v1208 = vmax.f32 %v1206, %v1207
  %v1209 = vrot.slane %v1208, 2
  %v1210 = vmax.f32 %v1208, %v1209
  %v1211 = vrot.slane %v1210, 1
  %v1212 = vmax.f32 %v1210, %v1211
  %v1213 = vsel %vm1037, %v882, -inf
  %v1214 = vrot.slane %v1213, 4
  %v1215 = vmax.f32 %v1213, %v1214
  %v1216 = vrot.slane %v1215, 2
  %v1217 = vmax.f32 %v1215, %v1216
  %v1218 = vrot.slane %v1217, 1
  %v1219 = vmax.f32 %v1217, %v1218
  %v1220 = vsel %vm1037, %v887, -inf
  %v1221 = vrot.slane %v1220, 4
  %v1222 = vmax.f32 %v1220, %v1221
  %v1223 = vrot.slane %v1222, 2
  %v1224 = vmax.f32 %v1222, %v1223
  %v1225 = vrot.slane %v1224, 1
  %v1226 = vmax.f32 %v1224, %v1225
  %v1227 = vsel %vm1037, %v890, -inf
  %v1228 = vrot.slane %v1227, 4
  %v1229 = vmax.f32 %v1227, %v1228
  %v1230 = vrot.slane %v1229, 2
  %v1231 = vmax.f32 %v1229, %v1230
  %v1232 = vrot.slane %v1231, 1
  %v1233 = vmax.f32 %v1231, %v1232
  %v1234 = vsel %vm1037, %v895, -inf
  %v1235 = vrot.slane %v1234, 4
  %v1236 = vmax.f32 %v1234, %v1235
  %v1237 = vrot.slane %v1236, 2
  %v1238 = vmax.f32 %v1236, %v1237
  %v1239 = vrot.slane %v1238, 1
  %v1240 = vmax.f32 %v1238, %v1239
  %v1241 = vsel %vm1037, %v898, -inf
  %v1242 = vrot.slane %v1241, 4
  %v1243 = vmax.f32 %v1241, %v1242
  %v1244 = vrot.slane %v1243, 2
  %v1245 = vmax.f32 %v1243, %v1244
  %v1246 = vrot.slane %v1245, 1
  %v1247 = vmax.f32 %v1245, %v1246
  %v1248 = vsel %vm1037, %v903, -inf
  %v1249 = vrot.slane %v1248, 4
  %v1250 = vmax.f32 %v1248, %v1249
  %v1251 = vrot.slane %v1250, 2
  %v1252 = vmax.f32 %v1250, %v1251
  %v1253 = vrot.slane %v1252, 1
  %v1254 = vmax.f32 %v1252, %v1253
  %v1255 = vsel %vm1037, %v906, -inf
  %v1256 = vrot.slane %v1255, 4
  %v1257 = vmax.f32 %v1255, %v1256
  %v1258 = vrot.slane %v1257, 2
  %v1259 = vmax.f32 %v1257, %v1258
  %v1260 = vrot.slane %v1259, 1
  %v1261 = vmax.f32 %v1259, %v1260
  %v1262 = vsel %vm1037, %v911, -inf
  %v1263 = vrot.slane %v1262, 4
  %v1264 = vmax.f32 %v1262, %v1263
  %v1265 = vrot.slane %v1264, 2
  %v1266 = vmax.f32 %v1264, %v1265
  %v1267 = vrot.slane %v1266, 1
  %v1268 = vmax.f32 %v1266, %v1267
  %v1269 = vsel %vm1037, %v914, -inf
  %v1270 = vrot.slane %v1269, 4
  %v1271 = vmax.f32 %v1269, %v1270
  %v1272 = vrot.slane %v1271, 2
  %v1273 = vmax.f32 %v1271, %v1272
  %v1274 = vrot.slane %v1273, 1
  %v1275 = vmax.f32 %v1273, %v1274
  %v1276 = vsel %vm1037, %v919, -inf
  %v1277 = vrot.slane %v1276, 4
  %v1278 = vmax.f32 %v1276, %v1277
  %v1279 = vrot.slane %v1278, 2
  %v1280 = vmax.f32 %v1278, %v1279
  %v1281 = vrot.slane %v1280, 1
  %v1282 = vmax.f32 %v1280, %v1281
  %v1283 = vsel %vm1037, %v922, -inf
  %v1284 = vrot.slane %v1283, 4
  %v1285 = vmax.f32 %v1283, %v1284
  %v1286 = vrot.slane %v1285, 2
  %v1287 = vmax.f32 %v1285, %v1286
  %v1288 = vrot.slane %v1287, 1
  %v1289 = vmax.f32 %v1287, %v1288
  %v1290 = vsel %vm1037, %v927, -inf
  %v1291 = vrot.slane %v1290, 4
  %v1292 = vmax.f32 %v1290, %v1291
  %v1293 = vrot.slane %v1292, 2
  %v1294 = vmax.f32 %v1292, %v1293
  %v1295 = vrot.slane %v1294, 1
  %v1296 = vmax.f32 %v1294, %v1295
  %v1297 = vsel %vm1037, %v930, -inf
  %v1298 = vrot.slane %v1297, 4
  %v1299 = vmax.f32 %v1297, %v1298
  %v1300 = vrot.slane %v1299, 2
  %v1301 = vmax.f32 %v1299, %v1300
  %v1302 = vrot.slane %v1301, 1
  %v1303 = vmax.f32 %v1301, %v1302
  %v1304 = vsel %vm1037, %v935, -inf
  %v1305 = vrot.slane %v1304, 4
  %v1306 = vmax.f32 %v1304, %v1305
  %v1307 = vrot.slane %v1306, 2
  %v1308 = vmax.f32 %v1306, %v1307
  %v1309 = vrot.slane %v1308, 1
  %v1310 = vmax.f32 %v1308, %v1309
  %v1311 = vsel %vm1037, %v938, -inf
  %v1312 = vrot.slane %v1311, 4
  %v1313 = vmax.f32 %v1311, %v1312
  %v1314 = vrot.slane %v1313, 2
  %v1315 = vmax.f32 %v1313, %v1314
  %v1316 = vrot.slane %v1315, 1
  %v1317 = vmax.f32 %v1315, %v1316
  %v1318 = vsel %vm1037, %v943, -inf
  %v1319 = vrot.slane %v1318, 4
  %v1320 = vmax.f32 %v1318, %v1319
  %v1321 = vrot.slane %v1320, 2
  %v1322 = vmax.f32 %v1320, %v1321
  %v1323 = vrot.slane %v1322, 1
  %v1324 = vmax.f32 %v1322, %v1323
  %v1325 = vsel %vm1037, %v946, -inf
  %v1326 = vrot.slane %v1325, 4
  %v1327 = vmax.f32 %v1325, %v1326
  %v1328 = vrot.slane %v1327, 2
  %v1329 = vmax.f32 %v1327, %v1328
  %v1330 = vrot.slane %v1329, 1
  %v1331 = vmax.f32 %v1329, %v1330
  %v1332 = vsel %vm1037, %v951, -inf
  %v1333 = vrot.slane %v1332, 4
  %v1334 = vmax.f32 %v1332, %v1333
  %v1335 = vrot.slane %v1334, 2
  %v1336 = vmax.f32 %v1334, %v1335
  %v1337 = vrot.slane %v1336, 1
  %v1338 = vmax.f32 %v1336, %v1337
  %v1339 = vsel %vm1037, %v954, -inf
  %v1340 = vrot.slane %v1339, 4
  %v1341 = vmax.f32 %v1339, %v1340
  %v1342 = vrot.slane %v1341, 2
  %v1343 = vmax.f32 %v1341, %v1342
  %v1344 = vrot.slane %v1343, 1
  %v1345 = vmax.f32 %v1343, %v1344
  %v1346 = vsel %vm1037, %v959, -inf
  %v1347 = vrot.slane %v1346, 4
  %v1348 = vmax.f32 %v1346, %v1347
  %v1349 = vrot.slane %v1348, 2
  %v1350 = vmax.f32 %v1348, %v1349
  %v1351 = vrot.slane %v1350, 1
  %v1352 = vmax.f32 %v1350, %v1351
  %v1353 = vsel %vm1037, %v962, -inf
  %v1354 = vrot.slane %v1353, 4
  %v1355 = vmax.f32 %v1353, %v1354
  %v1356 = vrot.slane %v1355, 2
  %v1357 = vmax.f32 %v1355, %v1356
  %v1358 = vrot.slane %v1357, 1
  %v1359 = vmax.f32 %v1357, %v1358
  %v1360 = vsel %vm1037, %v967, -inf
  %v1361 = vrot.slane %v1360, 4
  %v1362 = vmax.f32 %v1360, %v1361
  %v1363 = vrot.slane %v1362, 2
  %v1364 = vmax.f32 %v1362, %v1363
  %v1365 = vrot.slane %v1364, 1
  %v1366 = vmax.f32 %v1364, %v1365
  %v1367 = vsel %vm1037, %v970, -inf
  %v1368 = vrot.slane %v1367, 4
  %v1369 = vmax.f32 %v1367, %v1368
  %v1370 = vrot.slane %v1369, 2
  %v1371 = vmax.f32 %v1369, %v1370
  %v1372 = vrot.slane %v1371, 1
  %v1373 = vmax.f32 %v1371, %v1372
  %v1374 = vsel %vm1037, %v975, -inf
  %v1375 = vrot.slane %v1374, 4
  %v1376 = vmax.f32 %v1374, %v1375
  %v1377 = vrot.slane %v1376, 2
  %v1378 = vmax.f32 %v1376, %v1377
  %v1379 = vrot.slane %v1378, 1
  %v1380 = vmax.f32 %v1378, %v1379
  %v1381 = vsel %vm1037, %v978, -inf
  %v1382 = vrot.slane %v1381, 4
  %v1383 = vmax.f32 %v1381, %v1382
  %v1384 = vrot.slane %v1383, 2
  %v1385 = vmax.f32 %v1383, %v1384
  %v1386 = vrot.slane %v1385, 1
  %v1387 = vmax.f32 %v1385, %v1386
  %v1388 = vsel %vm1037, %v983, -inf
  %v1389 = vrot.slane %v1388, 4
  %v1390 = vmax.f32 %v1388, %v1389
  %v1391 = vrot.slane %v1390, 2
  %v1392 = vmax.f32 %v1390, %v1391
  %v1393 = vrot.slane %v1392, 1
  %v1394 = vmax.f32 %v1392, %v1393
  %v1395 = vsel %vm1037, %v986, -inf
  %v1396 = vrot.slane %v1395, 4
  %v1397 = vmax.f32 %v1395, %v1396
  %v1398 = vrot.slane %v1397, 2
  %v1399 = vmax.f32 %v1397, %v1398
  %v1400 = vrot.slane %v1399, 1
  %v1401 = vmax.f32 %v1399, %v1400
  %v1402 = vsel %vm1037, %v991, -inf
  %v1403 = vrot.slane %v1402, 4
  %v1404 = vmax.f32 %v1402, %v1403
  %v1405 = vrot.slane %v1404, 2
  %v1406 = vmax.f32 %v1404, %v1405
  %v1407 = vrot.slane %v1406, 1
  %v1408 = vmax.f32 %v1406, %v1407
  %v1409 = vsel %vm1037, %v994, -inf
  %v1410 = vrot.slane %v1409, 4
  %v1411 = vmax.f32 %v1409, %v1410
  %v1412 = vrot.slane %v1411, 2
  %v1413 = vmax.f32 %v1411, %v1412
  %v1414 = vrot.slane %v1413, 1
  %v1415 = vmax.f32 %v1413, %v1414
  %v1416 = vsel %vm1037, %v999, -inf
  %v1417 = vrot.slane %v1416, 4
  %v1418 = vmax.f32 %v1416, %v1417
  %v1419 = vrot.slane %v1418, 2
  %v1420 = vmax.f32 %v1418, %v1419
  %v1421 = vrot.slane %v1420, 1
  %v1422 = vmax.f32 %v1420, %v1421
  %v1423 = vsel %vm1037, %v1002, -inf
  %v1424 = vrot.slane %v1423, 4
  %v1425 = vmax.f32 %v1423, %v1424
  %v1426 = vrot.slane %v1425, 2
  %v1427 = vmax.f32 %v1425, %v1426
  %v1428 = vrot.slane %v1427, 1
  %v1429 = vmax.f32 %v1427, %v1428
  %v1430 = vsel %vm1037, %v1007, -inf
  %v1431 = vrot.slane %v1430, 4
  %v1432 = vmax.f32 %v1430, %v1431
  %v1433 = vrot.slane %v1432, 2
  %v1434 = vmax.f32 %v1432, %v1433
  %v1435 = vrot.slane %v1434, 1
  %v1436 = vmax.f32 %v1434, %v1435
  %v1437 = vsel %vm1037, %v1010, -inf
  %v1438 = vrot.slane %v1437, 4
  %v1439 = vmax.f32 %v1437, %v1438
  %v1440 = vrot.slane %v1439, 2
  %v1441 = vmax.f32 %v1439, %v1440
  %v1442 = vrot.slane %v1441, 1
  %v1443 = vmax.f32 %v1441, %v1442
  %v1444 = vsel %vm1037, %v1015, -inf
  %v1445 = vrot.slane %v1444, 4
  %v1446 = vmax.f32 %v1444, %v1445
  %v1447 = vrot.slane %v1446, 2
  %v1448 = vmax.f32 %v1446, %v1447
  %v1449 = vrot.slane %v1448, 1
  %v1450 = vmax.f32 %v1448, %v1449
  %v1451 = vsel %vm1037, %v1018, -inf
  %v1452 = vrot.slane %v1451, 4
  %v1453 = vmax.f32 %v1451, %v1452
  %v1454 = vrot.slane %v1453, 2
  %v1455 = vmax.f32 %v1453, %v1454
  %v1456 = vrot.slane %v1455, 1
  %v1457 = vmax.f32 %v1455, %v1456
  %v1458 = vsel %vm1037, %v1023, -inf
  %v1459 = vrot.slane %v1458, 4
  %v1460 = vmax.f32 %v1458, %v1459
  %v1461 = vrot.slane %v1460, 2
  %v1462 = vmax.f32 %v1460, %v1461
  %v1463 = vrot.slane %v1462, 1
  %v1464 = vmax.f32 %v1462, %v1463
  %v1465 = vsel %vm1037, %v1026, -inf
  %v1466 = vrot.slane %v1465, 4
  %v1467 = vmax.f32 %v1465, %v1466
  %v1468 = vrot.slane %v1467, 2
  %v1469 = vmax.f32 %v1467, %v1468
  %v1470 = vrot.slane %v1469, 1
  %v1471 = vmax.f32 %v1469, %v1470
  %v1472 = vsel %vm1037, %v1031, -inf
  %v1473 = vrot.slane %v1472, 4
  %v1474 = vmax.f32 %v1472, %v1473
  %v1475 = vrot.slane %v1474, 2
  %v1476 = vmax.f32 %v1474, %v1475
  %v1477 = vrot.slane %v1476, 1
  %v1478 = vmax.f32 %v1476, %v1477
  %v1479 = vsel %vm1037, %v1034, -inf
  %v1480 = vrot.slane %v1479, 4
  %v1481 = vmax.f32 %v1479, %v1480
  %v1482 = vrot.slane %v1481, 2
  %v1483 = vmax.f32 %v1481, %v1482
  %v1484 = vrot.slane %v1483, 1
  %v1485 = vmax.f32 %v1483, %v1484
  %v1486 = vsub.f32 %v783, %v1044
  %v1487 = vsub.f32 %v786, %v1051
  %v1488 = vsub.f32 %v791, %v1058
  %v1489 = vsub.f32 %v794, %v1065
  %v1490 = vsub.f32 %v799, %v1072
  %v1491 = vsub.f32 %v802, %v1079
  %v1492 = vsub.f32 %v807, %v1086
  %v1493 = vsub.f32 %v810, %v1093
  %v1494 = vsub.f32 %v815, %v1100
  %v1495 = vsub.f32 %v818, %v1107
  %v1496 = vsub.f32 %v823, %v1114
  %v1497 = vsub.f32 %v826, %v1121
  %v1498 = vsub.f32 %v831, %v1128
  %v1499 = vsub.f32 %v834, %v1135
  %v1500 = vsub.f32 %v839, %v1142
  %v1501 = vsub.f32 %v842, %v1149
  %v1502 = vsub.f32 %v847, %v1156
  %v1503 = vsub.f32 %v850, %v1163
  %v1504 = vsub.f32 %v855, %v1170
  %v1505 = vsub.f32 %v858, %v1177
  %v1506 = vsub.f32 %v863, %v1184
  %v1507 = vsub.f32 %v866, %v1191
  %v1508 = vsub.f32 %v871, %v1198
  %v1509 = vsub.f32 %v874, %v1205
  %v1510 = vsub.f32 %v879, %v1212
  %v1511 = vsub.f32 %v882, %v1219
  %v1512 = vsub.f32 %v887, %v1226
  %v1513 = vsub.f32 %v890, %v1233
  %v1514 = vsub.f32 %v895, %v1240
  %v1515 = vsub.f32 %v898, %v1247
  %v1516 = vsub.f32 %v903, %v1254
  %v1517 = vsub.f32 %v906, %v1261
  %v1518 = vsub.f32 %v911, %v1268
  %v1519 = vsub.f32 %v914, %v1275
  %v1520 = vsub.f32 %v919, %v1282
  %v1521 = vsub.f32 %v922, %v1289
  %v1522 = vsub.f32 %v927, %v1296
  %v1523 = vsub.f32 %v930, %v1303
  %v1524 = vsub.f32 %v935, %v1310
  %v1525 = vsub.f32 %v938, %v1317
  %v1526 = vsub.f32 %v943, %v1324
  %v1527 = vsub.f32 %v946, %v1331
  %v1528 = vsub.f32 %v951, %v1338
  %v1529 = vsub.f32 %v954, %v1345
  %v1530 = vsub.f32 %v959, %v1352
  %v1531 = vsub.f32 %v962, %v1359
  %v1532 = vsub.f32 %v967, %v1366
  %v1533 = vsub.f32 %v970, %v1373
  %v1534 = vsub.f32 %v975, %v1380
  %v1535 = vsub.f32 %v978, %v1387
  %v1536 = vsub.f32 %v983, %v1394
  %v1537 = vsub.f32 %v986, %v1401
  %v1538 = vsub.f32 %v991, %v1408
  %v1539 = vsub.f32 %v994, %v1415
  %v1540 = vsub.f32 %v999, %v1422
  %v1541 = vsub.f32 %v1002, %v1429
  %v1542 = vsub.f32 %v1007, %v1436
  %v1543 = vsub.f32 %v1010, %v1443
  %v1544 = vsub.f32 %v1015, %v1450
  %v1545 = vsub.f32 %v1018, %v1457
  %v1546 = vsub.f32 %v1023, %v1464
  %v1547 = vsub.f32 %v1026, %v1471
  %v1548 = vsub.f32 %v1031, %v1478
  %v1549 = vsub.f32 %v1034, %v1485
  %v1550 = vmul.f32 %v1486, 1.442695
  %v1551 = vpow.pop %v1550
  %v1552 = vmul.f32 %v1487, 1.442695
  %v1553 = vpow.pop %v1552
  %v1554 = vmul.f32 %v1488, 1.442695
  %v1555 = vpow.pop %v1554
  %v1556 = vmul.f32 %v1489, 1.442695
  %v1557 = vpow.pop %v1556
  %v1558 = vmul.f32 %v1490, 1.442695
  %v1559 = vpow.pop %v1558
  %v1560 = vmul.f32 %v1491, 1.442695
  %v1561 = vpow.pop %v1560
  %v1562 = vmul.f32 %v1492, 1.442695
  %v1563 = vpow.pop %v1562
  %v1564 = vmul.f32 %v1493, 1.442695
  %v1565 = vpow.pop %v1564
  %v1566 = vmul.f32 %v1494, 1.442695
  %v1567 = vpow.pop %v1566
  %v1568 = vmul.f32 %v1495, 1.442695
  %v1569 = vpow.pop %v1568
  %v1570 = vmul.f32 %v1496, 1.442695
  %v1571 = vpow.pop %v1570
  %v1572 = vmul.f32 %v1497, 1.442695
  %v1573 = vpow.pop %v1572
  %v1574 = vmul.f32 %v1498, 1.442695
  %v1575 = vpow.pop %v1574
  %v1576 = vmul.f32 %v1499, 1.442695
  %v1577 = vpow.pop %v1576
  %v1578 = vmul.f32 %v1500, 1.442695
  %v1579 = vpow.pop %v1578
  %v1580 = vmul.f32 %v1501, 1.442695
  %v1581 = vpow.pop %v1580
  %v1582 = vmul.f32 %v1502, 1.442695
  %v1583 = vpow.pop %v1582
  %v1584 = vmul.f32 %v1503, 1.442695
  %v1585 = vpow.pop %v1584
  %v1586 = vmul.f32 %v1504, 1.442695
  %v1587 = vpow.pop %v1586
  %v1588 = vmul.f32 %v1505, 1.442695
  %v1589 = vpow.pop %v1588
  %v1590 = vmul.f32 %v1506, 1.442695
  %v1591 = vpow.pop %v1590
  %v1592 = vmul.f32 %v1507, 1.442695
  %v1593 = vpow.pop %v1592
  %v1594 = vmul.f32 %v1508, 1.442695
  %v1595 = vpow.pop %v1594
  %v1596 = vmul.f32 %v1509, 1.442695
  %v1597 = vpow.pop %v1596
  %v1598 = vmul.f32 %v1510, 1.442695
  %v1599 = vpow.pop %v1598
  %v1600 = vmul.f32 %v1511, 1.442695
  %v1601 = vpow.pop %v1600
  %v1602 = vmul.f32 %v1512, 1.442695
  %v1603 = vpow.pop %v1602
  %v1604 = vmul.f32 %v1513, 1.442695
  %v1605 = vpow.pop %v1604
  %v1606 = vmul.f32 %v1514, 1.442695
  %v1607 = vpow.pop %v1606
  %v1608 = vmul.f32 %v1515, 1.442695
  %v1609 = vpow.pop %v1608
  %v1610 = vmul.f32 %v1516, 1.442695
  %v1611 = vpow.pop %v1610
  %v1612 = vmul.f32 %v1517, 1.442695
  %v1613 = vpow.pop %v1612
  %v1614 = vmul.f32 %v1518, 1.442695
  %v1615 = vpow.pop %v1614
  %v1616 = vmul.f32 %v1519, 1.442695
  %v1617 = vpow.pop %v1616
  %v1618 = vmul.f32 %v1520, 1.442695
  %v1619 = vpow.pop %v1618
  %v1620 = vmul.f32 %v1521, 1.442695
  %v1621 = vpow.pop %v1620
  %v1622 = vmul.f32 %v1522, 1.442695
  %v1623 = vpow.pop %v1622
  %v1624 = vmul.f32 %v1523, 1.442695
  %v1625 = vpow.pop %v1624
  %v1626 = vmul.f32 %v1524, 1.442695
  %v1627 = vpow.pop %v1626
  %v1628 = vmul.f32 %v1525, 1.442695
  %v1629 = vpow.pop %v1628
  %v1630 = vmul.f32 %v1526, 1.442695
  %v1631 = vpow.pop %v1630
  %v1632 = vmul.f32 %v1527, 1.442695
  %v1633 = vpow.pop %v1632
  %v1634 = vmul.f32 %v1528, 1.442695
  %v1635 = vpow.pop %v1634
  %v1636 = vmul.f32 %v1529, 1.442695
  %v1637 = vpow.pop %v1636
  %v1638 = vmul.f32 %v1530, 1.442695
  %v1639 = vpow.pop %v1638
  %v1640 = vmul.f32 %v1531, 1.442695
  %v1641 = vpow.pop %v1640
  %v1642 = vmul.f32 %v1532, 1.442695
  %v1643 = vpow.pop %v1642
  %v1644 = vmul.f32 %v1533, 1.442695
  %v1645 = vpow.pop %v1644
  %v1646 = vmul.f32 %v1534, 1.442695
  %v1647 = vpow.pop %v1646
  %v1648 = vmul.f32 %v1535, 1.442695
  %v1649 = vpow.pop %v1648
  %v1650 = vmul.f32 %v1536, 1.442695
  %v1651 = vpow.pop %v1650
  %v1652 = vmul.f32 %v1537, 1.442695
  %v1653 = vpow.pop %v1652
  %v1654 = vmul.f32 %v1538, 1.442695
  %v1655 = vpow.pop %v1654
  %v1656 = vmul.f32 %v1539, 1.442695
  %v1657 = vpow.pop %v1656
  %v1658 = vmul.f32 %v1540, 1.442695
  %v1659 = vpow.pop %v1658
  %v1660 = vmul.f32 %v1541, 1.442695
  %v1661 = vpow.pop %v1660
  %v1662 = vmul.f32 %v1542, 1.442695
  %v1663 = vpow.pop %v1662
  %v1664 = vmul.f32 %v1543, 1.442695
  %v1665 = vpow.pop %v1664
  %v1666 = vmul.f32 %v1544, 1.442695
  %v1667 = vpow.pop %v1666
  %v1668 = vmul.f32 %v1545, 1.442695
  %v1669 = vpow.pop %v1668
  %v1670 = vmul.f32 %v1546, 1.442695
  %v1671 = vpow.pop %v1670
  %v1672 = vmul.f32 %v1547, 1.442695
  %v1673 = vpow.pop %v1672
  %v1674 = vmul.f32 %v1548, 1.442695
  %v1675 = vpow.pop %v1674
  %v1676 = vmul.f32 %v1549, 1.442695
  %v1677 = vpow.pop %v1676
  %v1678 = vsel %vm1037, %v1551, 0.0
  %v1679 = vrot.slane %v1678, 4
  %v1680 = vadd.f32 %v1678, %v1679
  %v1681 = vrot.slane %v1680, 2
  %v1682 = vadd.f32 %v1680, %v1681
  %v1683 = vrot.slane %v1682, 1
  %v1684 = vadd.f32 %v1682, %v1683
  %v1685 = vsel %vm1037, %v1553, 0.0
  %v1686 = vrot.slane %v1685, 4
  %v1687 = vadd.f32 %v1685, %v1686
  %v1688 = vrot.slane %v1687, 2
  %v1689 = vadd.f32 %v1687, %v1688
  %v1690 = vrot.slane %v1689, 1
  %v1691 = vadd.f32 %v1689, %v1690
  %v1692 = vsel %vm1037, %v1555, 0.0
  %v1693 = vrot.slane %v1692, 4
  %v1694 = vadd.f32 %v1692, %v1693
  %v1695 = vrot.slane %v1694, 2
  %v1696 = vadd.f32 %v1694, %v1695
  %v1697 = vrot.slane %v1696, 1
  %v1698 = vadd.f32 %v1696, %v1697
  %v1699 = vsel %vm1037, %v1557, 0.0
  %v1700 = vrot.slane %v1699, 4
  %v1701 = vadd.f32 %v1699, %v1700
  %v1702 = vrot.slane %v1701, 2
  %v1703 = vadd.f32 %v1701, %v1702
  %v1704 = vrot.slane %v1703, 1
  %v1705 = vadd.f32 %v1703, %v1704
  %v1706 = vsel %vm1037, %v1559, 0.0
  %v1707 = vrot.slane %v1706, 4
  %v1708 = vadd.f32 %v1706, %v1707
  %v1709 = vrot.slane %v1708, 2
  %v1710 = vadd.f32 %v1708, %v1709
  %v1711 = vrot.slane %v1710, 1
  %v1712 = vadd.f32 %v1710, %v1711
  %v1713 = vsel %vm1037, %v1561, 0.0
  %v1714 = vrot.slane %v1713, 4
  %v1715 = vadd.f32 %v1713, %v1714
  %v1716 = vrot.slane %v1715, 2
  %v1717 = vadd.f32 %v1715, %v1716
  %v1718 = vrot.slane %v1717, 1
  %v1719 = vadd.f32 %v1717, %v1718
  %v1720 = vsel %vm1037, %v1563, 0.0
  %v1721 = vrot.slane %v1720, 4
  %v1722 = vadd.f32 %v1720, %v1721
  %v1723 = vrot.slane %v1722, 2
  %v1724 = vadd.f32 %v1722, %v1723
  %v1725 = vrot.slane %v1724, 1
  %v1726 = vadd.f32 %v1724, %v1725
  %v1727 = vsel %vm1037, %v1565, 0.0
  %v1728 = vrot.slane %v1727, 4
  %v1729 = vadd.f32 %v1727, %v1728
  %v1730 = vrot.slane %v1729, 2
  %v1731 = vadd.f32 %v1729, %v1730
  %v1732 = vrot.slane %v1731, 1
  %v1733 = vadd.f32 %v1731, %v1732
  %v1734 = vsel %vm1037, %v1567, 0.0
  %v1735 = vrot.slane %v1734, 4
  %v1736 = vadd.f32 %v1734, %v1735
  %v1737 = vrot.slane %v1736, 2
  %v1738 = vadd.f32 %v1736, %v1737
  %v1739 = vrot.slane %v1738, 1
  %v1740 = vadd.f32 %v1738, %v1739
  %v1741 = vsel %vm1037, %v1569, 0.0
  %v1742 = vrot.slane %v1741, 4
  %v1743 = vadd.f32 %v1741, %v1742
  %v1744 = vrot.slane %v1743, 2
  %v1745 = vadd.f32 %v1743, %v1744
  %v1746 = vrot.slane %v1745, 1
  %v1747 = vadd.f32 %v1745, %v1746
  %v1748 = vsel %vm1037, %v1571, 0.0
  %v1749 = vrot.slane %v1748, 4
  %v1750 = vadd.f32 %v1748, %v1749
  %v1751 = vrot.slane %v1750, 2
  %v1752 = vadd.f32 %v1750, %v1751
  %v1753 = vrot.slane %v1752, 1
  %v1754 = vadd.f32 %v1752, %v1753
  %v1755 = vsel %vm1037, %v1573, 0.0
  %v1756 = vrot.slane %v1755, 4
  %v1757 = vadd.f32 %v1755, %v1756
  %v1758 = vrot.slane %v1757, 2
  %v1759 = vadd.f32 %v1757, %v1758
  %v1760 = vrot.slane %v1759, 1
  %v1761 = vadd.f32 %v1759, %v1760
  %v1762 = vsel %vm1037, %v1575, 0.0
  %v1763 = vrot.slane %v1762, 4
  %v1764 = vadd.f32 %v1762, %v1763
  %v1765 = vrot.slane %v1764, 2
  %v1766 = vadd.f32 %v1764, %v1765
  %v1767 = vrot.slane %v1766, 1
  %v1768 = vadd.f32 %v1766, %v1767
  %v1769 = vsel %vm1037, %v1577, 0.0
  %v1770 = vrot.slane %v1769, 4
  %v1771 = vadd.f32 %v1769, %v1770
  %v1772 = vrot.slane %v1771, 2
  %v1773 = vadd.f32 %v1771, %v1772
  %v1774 = vrot.slane %v1773, 1
  %v1775 = vadd.f32 %v1773, %v1774
  %v1776 = vsel %vm1037, %v1579, 0.0
  %v1777 = vrot.slane %v1776, 4
  %v1778 = vadd.f32 %v1776, %v1777
  %v1779 = vrot.slane %v1778, 2
  %v1780 = vadd.f32 %v1778, %v1779
  %v1781 = vrot.slane %v1780, 1
  %v1782 = vadd.f32 %v1780, %v1781
  %v1783 = vsel %vm1037, %v1581, 0.0
  %v1784 = vrot.slane %v1783, 4
  %v1785 = vadd.f32 %v1783, %v1784
  %v1786 = vrot.slane %v1785, 2
  %v1787 = vadd.f32 %v1785, %v1786
  %v1788 = vrot.slane %v1787, 1
  %v1789 = vadd.f32 %v1787, %v1788
  %v1790 = vsel %vm1037, %v1583, 0.0
  %v1791 = vrot.slane %v1790, 4
  %v1792 = vadd.f32 %v1790, %v1791
  %v1793 = vrot.slane %v1792, 2
  %v1794 = vadd.f32 %v1792, %v1793
  %v1795 = vrot.slane %v1794, 1
  %v1796 = vadd.f32 %v1794, %v1795
  %v1797 = vsel %vm1037, %v1585, 0.0
  %v1798 = vrot.slane %v1797, 4
  %v1799 = vadd.f32 %v1797, %v1798
  %v1800 = vrot.slane %v1799, 2
  %v1801 = vadd.f32 %v1799, %v1800
  %v1802 = vrot.slane %v1801, 1
  %v1803 = vadd.f32 %v1801, %v1802
  %v1804 = vsel %vm1037, %v1587, 0.0
  %v1805 = vrot.slane %v1804, 4
  %v1806 = vadd.f32 %v1804, %v1805
  %v1807 = vrot.slane %v1806, 2
  %v1808 = vadd.f32 %v1806, %v1807
  %v1809 = vrot.slane %v1808, 1
  %v1810 = vadd.f32 %v1808, %v1809
  %v1811 = vsel %vm1037, %v1589, 0.0
  %v1812 = vrot.slane %v1811, 4
  %v1813 = vadd.f32 %v1811, %v1812
  %v1814 = vrot.slane %v1813, 2
  %v1815 = vadd.f32 %v1813, %v1814
  %v1816 = vrot.slane %v1815, 1
  %v1817 = vadd.f32 %v1815, %v1816
  %v1818 = vsel %vm1037, %v1591, 0.0
  %v1819 = vrot.slane %v1818, 4
  %v1820 = vadd.f32 %v1818, %v1819
  %v1821 = vrot.slane %v1820, 2
  %v1822 = vadd.f32 %v1820, %v1821
  %v1823 = vrot.slane %v1822, 1
  %v1824 = vadd.f32 %v1822, %v1823
  %v1825 = vsel %vm1037, %v1593, 0.0
  %v1826 = vrot.slane %v1825, 4
  %v1827 = vadd.f32 %v1825, %v1826
  %v1828 = vrot.slane %v1827, 2
  %v1829 = vadd.f32 %v1827, %v1828
  %v1830 = vrot.slane %v1829, 1
  %v1831 = vadd.f32 %v1829, %v1830
  %v1832 = vsel %vm1037, %v1595, 0.0
  %v1833 = vrot.slane %v1832, 4
  %v1834 = vadd.f32 %v1832, %v1833
  %v1835 = vrot.slane %v1834, 2
  %v1836 = vadd.f32 %v1834, %v1835
  %v1837 = vrot.slane %v1836, 1
  %v1838 = vadd.f32 %v1836, %v1837
  %v1839 = vsel %vm1037, %v1597, 0.0
  %v1840 = vrot.slane %v1839, 4
  %v1841 = vadd.f32 %v1839, %v1840
  %v1842 = vrot.slane %v1841, 2
  %v1843 = vadd.f32 %v1841, %v1842
  %v1844 = vrot.slane %v1843, 1
  %v1845 = vadd.f32 %v1843, %v1844
  %v1846 = vsel %vm1037, %v1599, 0.0
  %v1847 = vrot.slane %v1846, 4
  %v1848 = vadd.f32 %v1846, %v1847
  %v1849 = vrot.slane %v1848, 2
  %v1850 = vadd.f32 %v1848, %v1849
  %v1851 = vrot.slane %v1850, 1
  %v1852 = vadd.f32 %v1850, %v1851
  %v1853 = vsel %vm1037, %v1601, 0.0
  %v1854 = vrot.slane %v1853, 4
  %v1855 = vadd.f32 %v1853, %v1854
  %v1856 = vrot.slane %v1855, 2
  %v1857 = vadd.f32 %v1855, %v1856
  %v1858 = vrot.slane %v1857, 1
  %v1859 = vadd.f32 %v1857, %v1858
  %v1860 = vsel %vm1037, %v1603, 0.0
  %v1861 = vrot.slane %v1860, 4
  %v1862 = vadd.f32 %v1860, %v1861
  %v1863 = vrot.slane %v1862, 2
  %v1864 = vadd.f32 %v1862, %v1863
  %v1865 = vrot.slane %v1864, 1
  %v1866 = vadd.f32 %v1864, %v1865
  %v1867 = vsel %vm1037, %v1605, 0.0
  %v1868 = vrot.slane %v1867, 4
  %v1869 = vadd.f32 %v1867, %v1868
  %v1870 = vrot.slane %v1869, 2
  %v1871 = vadd.f32 %v1869, %v1870
  %v1872 = vrot.slane %v1871, 1
  %v1873 = vadd.f32 %v1871, %v1872
  %v1874 = vsel %vm1037, %v1607, 0.0
  %v1875 = vrot.slane %v1874, 4
  %v1876 = vadd.f32 %v1874, %v1875
  %v1877 = vrot.slane %v1876, 2
  %v1878 = vadd.f32 %v1876, %v1877
  %v1879 = vrot.slane %v1878, 1
  %v1880 = vadd.f32 %v1878, %v1879
  %v1881 = vsel %vm1037, %v1609, 0.0
  %v1882 = vrot.slane %v1881, 4
  %v1883 = vadd.f32 %v1881, %v1882
  %v1884 = vrot.slane %v1883, 2
  %v1885 = vadd.f32 %v1883, %v1884
  %v1886 = vrot.slane %v1885, 1
  %v1887 = vadd.f32 %v1885, %v1886
  %v1888 = vsel %vm1037, %v1611, 0.0
  %v1889 = vrot.slane %v1888, 4
  %v1890 = vadd.f32 %v1888, %v1889
  %v1891 = vrot.slane %v1890, 2
  %v1892 = vadd.f32 %v1890, %v1891
  %v1893 = vrot.slane %v1892, 1
  %v1894 = vadd.f32 %v1892, %v1893
  %v1895 = vsel %vm1037, %v1613, 0.0
  %v1896 = vrot.slane %v1895, 4
  %v1897 = vadd.f32 %v1895, %v1896
  %v1898 = vrot.slane %v1897, 2
  %v1899 = vadd.f32 %v1897, %v1898
  %v1900 = vrot.slane %v1899, 1
  %v1901 = vadd.f32 %v1899, %v1900
  %v1902 = vsel %vm1037, %v1615, 0.0
  %v1903 = vrot.slane %v1902, 4
  %v1904 = vadd.f32 %v1902, %v1903
  %v1905 = vrot.slane %v1904, 2
  %v1906 = vadd.f32 %v1904, %v1905
  %v1907 = vrot.slane %v1906, 1
  %v1908 = vadd.f32 %v1906, %v1907
  %v1909 = vsel %vm1037, %v1617, 0.0
  %v1910 = vrot.slane %v1909, 4
  %v1911 = vadd.f32 %v1909, %v1910
  %v1912 = vrot.slane %v1911, 2
  %v1913 = vadd.f32 %v1911, %v1912
  %v1914 = vrot.slane %v1913, 1
  %v1915 = vadd.f32 %v1913, %v1914
  %v1916 = vsel %vm1037, %v1619, 0.0
  %v1917 = vrot.slane %v1916, 4
  %v1918 = vadd.f32 %v1916, %v1917
  %v1919 = vrot.slane %v1918, 2
  %v1920 = vadd.f32 %v1918, %v1919
  %v1921 = vrot.slane %v1920, 1
  %v1922 = vadd.f32 %v1920, %v1921
  %v1923 = vsel %vm1037, %v1621, 0.0
  %v1924 = vrot.slane %v1923, 4
  %v1925 = vadd.f32 %v1923, %v1924
  %v1926 = vrot.slane %v1925, 2
  %v1927 = vadd.f32 %v1925, %v1926
  %v1928 = vrot.slane %v1927, 1
  %v1929 = vadd.f32 %v1927, %v1928
  %v1930 = vsel %vm1037, %v1623, 0.0
  %v1931 = vrot.slane %v1930, 4
  %v1932 = vadd.f32 %v1930, %v1931
  %v1933 = vrot.slane %v1932, 2
  %v1934 = vadd.f32 %v1932, %v1933
  %v1935 = vrot.slane %v1934, 1
  %v1936 = vadd.f32 %v1934, %v1935
  %v1937 = vsel %vm1037, %v1625, 0.0
  %v1938 = vrot.slane %v1937, 4
  %v1939 = vadd.f32 %v1937, %v1938
  %v1940 = vrot.slane %v1939, 2
  %v1941 = vadd.f32 %v1939, %v1940
  %v1942 = vrot.slane %v1941, 1
  %v1943 = vadd.f32 %v1941, %v1942
  %v1944 = vsel %vm1037, %v1627, 0.0
  %v1945 = vrot.slane %v1944, 4
  %v1946 = vadd.f32 %v1944, %v1945
  %v1947 = vrot.slane %v1946, 2
  %v1948 = vadd.f32 %v1946, %v1947
  %v1949 = vrot.slane %v1948, 1
  %v1950 = vadd.f32 %v1948, %v1949
  %v1951 = vsel %vm1037, %v1629, 0.0
  %v1952 = vrot.slane %v1951, 4
  %v1953 = vadd.f32 %v1951, %v1952
  %v1954 = vrot.slane %v1953, 2
  %v1955 = vadd.f32 %v1953, %v1954
  %v1956 = vrot.slane %v1955, 1
  %v1957 = vadd.f32 %v1955, %v1956
  %v1958 = vsel %vm1037, %v1631, 0.0
  %v1959 = vrot.slane %v1958, 4
  %v1960 = vadd.f32 %v1958, %v1959
  %v1961 = vrot.slane %v1960, 2
  %v1962 = vadd.f32 %v1960, %v1961
  %v1963 = vrot.slane %v1962, 1
  %v1964 = vadd.f32 %v1962, %v1963
  %v1965 = vsel %vm1037, %v1633, 0.0
  %v1966 = vrot.slane %v1965, 4
  %v1967 = vadd.f32 %v1965, %v1966
  %v1968 = vrot.slane %v1967, 2
  %v1969 = vadd.f32 %v1967, %v1968
  %v1970 = vrot.slane %v1969, 1
  %v1971 = vadd.f32 %v1969, %v1970
  %v1972 = vsel %vm1037, %v1635, 0.0
  %v1973 = vrot.slane %v1972, 4
  %v1974 = vadd.f32 %v1972, %v1973
  %v1975 = vrot.slane %v1974, 2
  %v1976 = vadd.f32 %v1974, %v1975
  %v1977 = vrot.slane %v1976, 1
  %v1978 = vadd.f32 %v1976, %v1977
  %v1979 = vsel %vm1037, %v1637, 0.0
  %v1980 = vrot.slane %v1979, 4
  %v1981 = vadd.f32 %v1979, %v1980
  %v1982 = vrot.slane %v1981, 2
  %v1983 = vadd.f32 %v1981, %v1982
  %v1984 = vrot.slane %v1983, 1
  %v1985 = vadd.f32 %v1983, %v1984
  %v1986 = vsel %vm1037, %v1639, 0.0
  %v1987 = vrot.slane %v1986, 4
  %v1988 = vadd.f32 %v1986, %v1987
  %v1989 = vrot.slane %v1988, 2
  %v1990 = vadd.f32 %v1988, %v1989
  %v1991 = vrot.slane %v1990, 1
  %v1992 = vadd.f32 %v1990, %v1991
  %v1993 = vsel %vm1037, %v1641, 0.0
  %v1994 = vrot.slane %v1993, 4
  %v1995 = vadd.f32 %v1993, %v1994
  %v1996 = vrot.slane %v1995, 2
  %v1997 = vadd.f32 %v1995, %v1996
  %v1998 = vrot.slane %v1997, 1
  %v1999 = vadd.f32 %v1997, %v1998
  %v2000 = vsel %vm1037, %v1643, 0.0
  %v2001 = vrot.slane %v2000, 4
  %v2002 = vadd.f32 %v2000, %v2001
  %v2003 = vrot.slane %v2002, 2
  %v2004 = vadd.f32 %v2002, %v2003
  %v2005 = vrot.slane %v2004, 1
  %v2006 = vadd.f32 %v2004, %v2005
  %v2007 = vsel %vm1037, %v1645, 0.0
  %v2008 = vrot.slane %v2007, 4
  %v2009 = vadd.f32 %v2007, %v2008
  %v2010 = vrot.slane %v2009, 2
  %v2011 = vadd.f32 %v2009, %v2010
  %v2012 = vrot.slane %v2011, 1
  %v2013 = vadd.f32 %v2011, %v2012
  %v2014 = vsel %vm1037, %v1647, 0.0
  %v2015 = vrot.slane %v2014, 4
  %v2016 = vadd.f32 %v2014, %v2015
  %v2017 = vrot.slane %v2016, 2
  %v2018 = vadd.f32 %v2016, %v2017
  %v2019 = vrot.slane %v2018, 1
  %v2020 = vadd.f32 %v2018, %v2019
  %v2021 = vsel %vm1037, %v1649, 0.0
  %v2022 = vrot.slane %v2021, 4
  %v2023 = vadd.f32 %v2021, %v2022
  %v2024 = vrot.slane %v2023, 2
  %v2025 = vadd.f32 %v2023, %v2024
  %v2026 = vrot.slane %v2025, 1
  %v2027 = vadd.f32 %v2025, %v2026
  %v2028 = vsel %vm1037, %v1651, 0.0
  %v2029 = vrot.slane %v2028, 4
  %v2030 = vadd.f32 %v2028, %v2029
  %v2031 = vrot.slane %v2030, 2
  %v2032 = vadd.f32 %v2030, %v2031
  %v2033 = vrot.slane %v2032, 1
  %v2034 = vadd.f32 %v2032, %v2033
  %v2035 = vsel %vm1037, %v1653, 0.0
  %v2036 = vrot.slane %v2035, 4
  %v2037 = vadd.f32 %v2035, %v2036
  %v2038 = vrot.slane %v2037, 2
  %v2039 = vadd.f32 %v2037, %v2038
  %v2040 = vrot.slane %v2039, 1
  %v2041 = vadd.f32 %v2039, %v2040
  %v2042 = vsel %vm1037, %v1655, 0.0
  %v2043 = vrot.slane %v2042, 4
  %v2044 = vadd.f32 %v2042, %v2043
  %v2045 = vrot.slane %v2044, 2
  %v2046 = vadd.f32 %v2044, %v2045
  %v2047 = vrot.slane %v2046, 1
  %v2048 = vadd.f32 %v2046, %v2047
  %v2049 = vsel %vm1037, %v1657, 0.0
  %v2050 = vrot.slane %v2049, 4
  %v2051 = vadd.f32 %v2049, %v2050
  %v2052 = vrot.slane %v2051, 2
  %v2053 = vadd.f32 %v2051, %v2052
  %v2054 = vrot.slane %v2053, 1
  %v2055 = vadd.f32 %v2053, %v2054
  %v2056 = vsel %vm1037, %v1659, 0.0
  %v2057 = vrot.slane %v2056, 4
  %v2058 = vadd.f32 %v2056, %v2057
  %v2059 = vrot.slane %v2058, 2
  %v2060 = vadd.f32 %v2058, %v2059
  %v2061 = vrot.slane %v2060, 1
  %v2062 = vadd.f32 %v2060, %v2061
  %v2063 = vsel %vm1037, %v1661, 0.0
  %v2064 = vrot.slane %v2063, 4
  %v2065 = vadd.f32 %v2063, %v2064
  %v2066 = vrot.slane %v2065, 2
  %v2067 = vadd.f32 %v2065, %v2066
  %v2068 = vrot.slane %v2067, 1
  %v2069 = vadd.f32 %v2067, %v2068
  %v2070 = vsel %vm1037, %v1663, 0.0
  %v2071 = vrot.slane %v2070, 4
  %v2072 = vadd.f32 %v2070, %v2071
  %v2073 = vrot.slane %v2072, 2
  %v2074 = vadd.f32 %v2072, %v2073
  %v2075 = vrot.slane %v2074, 1
  %v2076 = vadd.f32 %v2074, %v2075
  %v2077 = vsel %vm1037, %v1665, 0.0
  %v2078 = vrot.slane %v2077, 4
  %v2079 = vadd.f32 %v2077, %v2078
  %v2080 = vrot.slane %v2079, 2
  %v2081 = vadd.f32 %v2079, %v2080
  %v2082 = vrot.slane %v2081, 1
  %v2083 = vadd.f32 %v2081, %v2082
  %v2084 = vsel %vm1037, %v1667, 0.0
  %v2085 = vrot.slane %v2084, 4
  %v2086 = vadd.f32 %v2084, %v2085
  %v2087 = vrot.slane %v2086, 2
  %v2088 = vadd.f32 %v2086, %v2087
  %v2089 = vrot.slane %v2088, 1
  %v2090 = vadd.f32 %v2088, %v2089
  %v2091 = vsel %vm1037, %v1669, 0.0
  %v2092 = vrot.slane %v2091, 4
  %v2093 = vadd.f32 %v2091, %v2092
  %v2094 = vrot.slane %v2093, 2
  %v2095 = vadd.f32 %v2093, %v2094
  %v2096 = vrot.slane %v2095, 1
  %v2097 = vadd.f32 %v2095, %v2096
  %v2098 = vsel %vm1037, %v1671, 0.0
  %v2099 = vrot.slane %v2098, 4
  %v2100 = vadd.f32 %v2098, %v2099
  %v2101 = vrot.slane %v2100, 2
  %v2102 = vadd.f32 %v2100, %v2101
  %v2103 = vrot.slane %v2102, 1
  %v2104 = vadd.f32 %v2102, %v2103
  %v2105 = vsel %vm1037, %v1673, 0.0
  %v2106 = vrot.slane %v2105, 4
  %v2107 = vadd.f32 %v2105, %v2106
  %v2108 = vrot.slane %v2107, 2
  %v2109 = vadd.f32 %v2107, %v2108
  %v2110 = vrot.slane %v2109, 1
  %v2111 = vadd.f32 %v2109, %v2110
  %v2112 = vsel %vm1037, %v1675, 0.0
  %v2113 = vrot.slane %v2112, 4
  %v2114 = vadd.f32 %v2112, %v2113
  %v2115 = vrot.slane %v2114, 2
  %v2116 = vadd.f32 %v2114, %v2115
  %v2117 = vrot.slane %v2116, 1
  %v2118 = vadd.f32 %v2116, %v2117
  %v2119 = vsel %vm1037, %v1677, 0.0
  %v2120 = vrot.slane %v2119, 4
  %v2121 = vadd.f32 %v2119, %v2120
  %v2122 = vrot.slane %v2121, 2
  %v2123 = vadd.f32 %v2121, %v2122
  %v2124 = vrot.slane %v2123, 1
  %v2125 = vadd.f32 %v2123, %v2124
  %v2126 = vrcp.pop %v1684
  %v2127 = vmul.f32 %v1551, %v2126
  %v2128 = vrcp.pop %v1691
  %v2129 = vmul.f32 %v1553, %v2128
  %v2130 = vrcp.pop %v1698
  %v2131 = vmul.f32 %v1555, %v2130
  %v2132 = vrcp.pop %v1705
  %v2133 = vmul.f32 %v1557, %v2132
  %v2134 = vrcp.pop %v1712
  %v2135 = vmul.f32 %v1559, %v2134
  %v2136 = vrcp.pop %v1719
  %v2137 = vmul.f32 %v1561, %v2136
  %v2138 = vrcp.pop %v1726
  %v2139 = vmul.f32 %v1563, %v2138
  %v2140 = vrcp.pop %v1733
  %v2141 = vmul.f32 %v1565, %v2140
  %v2142 = vrcp.pop %v1740
  %v2143 = vmul.f32 %v1567, %v2142
  %v2144 = vrcp.pop %v1747
  %v2145 = vmul.f32 %v1569, %v2144
  %v2146 = vrcp.pop %v1754
  %v2147 = vmul.f32 %v1571, %v2146
  %v2148 = vrcp.pop %v1761
  %v2149 = vmul.f32 %v1573, %v2148
  %v2150 = vrcp.pop %v1768
  %v2151 = vmul.f32 %v1575, %v2150
  %v2152 = vrcp.pop %v1775
  %v2153 = vmul.f32 %v1577, %v2152
  %v2154 = vrcp.pop %v1782
  %v2155 = vmul.f32 %v1579, %v2154
  %v2156 = vrcp.pop %v1789
  %v2157 = vmul.f32 %v1581, %v2156
  %v2158 = vrcp.pop %v1796
  %v2159 = vmul.f32 %v1583, %v2158
  %v2160 = vrcp.pop %v1803
  %v2161 = vmul.f32 %v1585, %v2160
  %v2162 = vrcp.pop %v1810
  %v2163 = vmul.f32 %v1587, %v2162
  %v2164 = vrcp.pop %v1817
  %v2165 = vmul.f32 %v1589, %v2164
  %v2166 = vrcp.pop %v1824
  %v2167 = vmul.f32 %v1591, %v2166
  %v2168 = vrcp.pop %v1831
  %v2169 = vmul.f32 %v1593, %v2168
  %v2170 = vrcp.pop %v1838
  %v2171 = vmul.f32 %v1595, %v2170
  %v2172 = vrcp.pop %v1845
  %v2173 = vmul.f32 %v1597, %v2172
  %v2174 = vrcp.pop %v1852
  %v2175 = vmul.f32 %v1599, %v2174
  %v2176 = vrcp.pop %v1859
  %v2177 = vmul.f32 %v1601, %v2176
  %v2178 = vrcp.pop %v1866
  %v2179 = vmul.f32 %v1603, %v2178
  %v2180 = vrcp.pop %v1873
  %v2181 = vmul.f32 %v1605, %v2180
  %v2182 = vrcp.pop %v1880
  %v2183 = vmul.f32 %v1607, %v2182
  %v2184 = vrcp.pop %v1887
  %v2185 = vmul.f32 %v1609, %v2184
  %v2186 = vrcp.pop %v1894
  %v2187 = vmul.f32 %v1611, %v2186
  %v2188 = vrcp.pop %v1901
  %v2189 = vmul.f32 %v1613, %v2188
  %v2190 = vrcp.pop %v1908
  %v2191 = vmul.f32 %v1615, %v2190
  %v2192 = vrcp.pop %v1915
  %v2193 = vmul.f32 %v1617, %v2192
  %v2194 = vrcp.pop %v1922
  %v2195 = vmul.f32 %v1619, %v2194
  %v2196 = vrcp.pop %v1929
  %v2197 = vmul.f32 %v1621, %v2196
  %v2198 = vrcp.pop %v1936
  %v2199 = vmul.f32 %v1623, %v2198
  %v2200 = vrcp.pop %v1943
  %v2201 = vmul.f32 %v1625, %v2200
  %v2202 = vrcp.pop %v1950
  %v2203 = vmul.f32 %v1627, %v2202
  %v2204 = vrcp.pop %v1957
  %v2205 = vmul.f32 %v1629, %v2204
  %v2206 = vrcp.pop %v1964
  %v2207 = vmul.f32 %v1631, %v2206
  %v2208 = vrcp.pop %v1971
  %v2209 = vmul.f32 %v1633, %v2208
  %v2210 = vrcp.pop %v1978
  %v2211 = vmul.f32 %v1635, %v2210
  %v2212 = vrcp.pop %v1985
  %v2213 = vmul.f32 %v1637, %v2212
  %v2214 = vrcp.pop %v1992
  %v2215 = vmul.f32 %v1639, %v2214
  %v2216 = vrcp.pop %v1999
  %v2217 = vmul.f32 %v1641, %v2216
  %v2218 = vrcp.pop %v2006
  %v2219 = vmul.f32 %v1643, %v2218
  %v2220 = vrcp.pop %v2013
  %v2221 = vmul.f32 %v1645, %v2220
  %v2222 = vrcp.pop %v2020
  %v2223 = vmul.f32 %v1647, %v2222
  %v2224 = vrcp.pop %v2027
  %v2225 = vmul.f32 %v1649, %v2224
  %v2226 = vrcp.pop %v2034
  %v2227 = vmul.f32 %v1651, %v2226
  %v2228 = vrcp.pop %v2041
  %v2229 = vmul.f32 %v1653, %v2228
  %v2230 = vrcp.pop %v2048
  %v2231 = vmul.f32 %v1655, %v2230
  %v2232 = vrcp.pop %v2055
  %v2233 = vmul.f32 %v1657, %v2232
  %v2234 = vrcp.pop %v2062
  %v2235 = vmul.f32 %v1659, %v2234
  %v2236 = vrcp.pop %v2069
  %v2237 = vmul.f32 %v1661, %v2236
  %v2238 = vrcp.pop %v2076
  %v2239 = vmul.f32 %v1663, %v2238
  %v2240 = vrcp.pop %v2083
  %v2241 = vmul.f32 %v1665, %v2240
  %v2242 = vrcp.pop %v2090
  %v2243 = vmul.f32 %v1667, %v2242
  %v2244 = vrcp.pop %v2097
  %v2245 = vmul.f32 %v1669, %v2244
  %v2246 = vrcp.pop %v2104
  %v2247 = vmul.f32 %v1671, %v2246
  %v2248 = vrcp.pop %v2111
  %v2249 = vmul.f32 %v1673, %v2248
  %v2250 = vrcp.pop %v2118
  %v2251 = vmul.f32 %v1675, %v2250
  %v2252 = vrcp.pop %v2125
  %v2253 = vmul.f32 %v1677, %v2252
  %2254 = vst.msk [vmem:[%s4] sm:$0xff] %vm1037, %v2127
  %2255 = vst.msk [vmem:[%s4 + $0x8] sm:$0xff] %vm1037, %v2129
  %2256 = vst.msk [vmem:[%s4 + $0x10] sm:$0xff] %vm1037, %v2131
  %2257 = vst.msk [vmem:[%s4 + $0x18] sm:$0xff] %vm1037, %v2133
  %2258 = vst.msk [vmem:[%s4 + $0x20] sm:$0xff] %vm1037, %v2135
  %2259 = vst.msk [vmem:[%s4 + $0x28] sm:$0xff] %vm1037, %v2137
  %2260 = vst.msk [vmem:[%s4 + $0x30] sm:$0xff] %vm1037, %v2139
  %2261 = vst.msk [vmem:[%s4 + $0x38] sm:$0xff] %vm1037, %v2141
  %2262 = vst.msk [vmem:[%s4 + $0x40] sm:$0xff] %vm1037, %v2143
  %2263 = vst.msk [vmem:[%s4 + $0x48] sm:$0xff] %vm1037, %v2145
  %2264 = vst.msk [vmem:[%s4 + $0x50] sm:$0xff] %vm1037, %v2147
  %2265 = vst.msk [vmem:[%s4 + $0x58] sm:$0xff] %vm1037, %v2149
  %2266 = vst.msk [vmem:[%s4 + $0x60] sm:$0xff] %vm1037, %v2151
  %2267 = vst.msk [vmem:[%s4 + $0x68] sm:$0xff] %vm1037, %v2153
  %2268 = vst.msk [vmem:[%s4 + $0x70] sm:$0xff] %vm1037, %v2155
  %2269 = vst.msk [vmem:[%s4 + $0x78] sm:$0xff] %vm1037, %v2157
  %2270 = vst.msk [vmem:[%s4 + $0x80] sm:$0xff] %vm1037, %v2159
  %2271 = vst.msk [vmem:[%s4 + $0x88] sm:$0xff] %vm1037, %v2161
  %2272 = vst.msk [vmem:[%s4 + $0x90] sm:$0xff] %vm1037, %v2163
  %2273 = vst.msk [vmem:[%s4 + $0x98] sm:$0xff] %vm1037, %v2165
  %2274 = vst.msk [vmem:[%s4 + $0xa0] sm:$0xff] %vm1037, %v2167
  %2275 = vst.msk [vmem:[%s4 + $0xa8] sm:$0xff] %vm1037, %v2169
  %2276 = vst.msk [vmem:[%s4 + $0xb0] sm:$0xff] %vm1037, %v2171
  %2277 = vst.msk [vmem:[%s4 + $0xb8] sm:$0xff] %vm1037, %v2173
  %2278 = vst.msk [vmem:[%s4 + $0xc0] sm:$0xff] %vm1037, %v2175
  %2279 = vst.msk [vmem:[%s4 + $0xc8] sm:$0xff] %vm1037, %v2177
  %2280 = vst.msk [vmem:[%s4 + $0xd0] sm:$0xff] %vm1037, %v2179
  %2281 = vst.msk [vmem:[%s4 + $0xd8] sm:$0xff] %vm1037, %v2181
  %2282 = vst.msk [vmem:[%s4 + $0xe0] sm:$0xff] %vm1037, %v2183
  %2283 = vst.msk [vmem:[%s4 + $0xe8] sm:$0xff] %vm1037, %v2185
  %2284 = vst.msk [vmem:[%s4 + $0xf0] sm:$0xff] %vm1037, %v2187
  %2285 = vst.msk [vmem:[%s4 + $0xf8] sm:$0xff] %vm1037, %v2189
  %2286 = vst.msk [vmem:[%s4 + $0x100] sm:$0xff] %vm1037, %v2191
  %2287 = vst.msk [vmem:[%s4 + $0x108] sm:$0xff] %vm1037, %v2193
  %2288 = vst.msk [vmem:[%s4 + $0x110] sm:$0xff] %vm1037, %v2195
  %2289 = vst.msk [vmem:[%s4 + $0x118] sm:$0xff] %vm1037, %v2197
  %2290 = vst.msk [vmem:[%s4 + $0x120] sm:$0xff] %vm1037, %v2199
  %2291 = vst.msk [vmem:[%s4 + $0x128] sm:$0xff] %vm1037, %v2201
  %2292 = vst.msk [vmem:[%s4 + $0x130] sm:$0xff] %vm1037, %v2203
  %2293 = vst.msk [vmem:[%s4 + $0x138] sm:$0xff] %vm1037, %v2205
  %2294 = vst.msk [vmem:[%s4 + $0x140] sm:$0xff] %vm1037, %v2207
  %2295 = vst.msk [vmem:[%s4 + $0x148] sm:$0xff] %vm1037, %v2209
  %2296 = vst.msk [vmem:[%s4 + $0x150] sm:$0xff] %vm1037, %v2211
  %2297 = vst.msk [vmem:[%s4 + $0x158] sm:$0xff] %vm1037, %v2213
  %2298 = vst.msk [vmem:[%s4 + $0x160] sm:$0xff] %vm1037, %v2215
  %2299 = vst.msk [vmem:[%s4 + $0x168] sm:$0xff] %vm1037, %v2217
  %2300 = vst.msk [vmem:[%s4 + $0x170] sm:$0xff] %vm1037, %v2219
  %2301 = vst.msk [vmem:[%s4 + $0x178] sm:$0xff] %vm1037, %v2221
  %2302 = vst.msk [vmem:[%s4 + $0x180] sm:$0xff] %vm1037, %v2223
  %2303 = vst.msk [vmem:[%s4 + $0x188] sm:$0xff] %vm1037, %v2225
  %2304 = vst.msk [vmem:[%s4 + $0x190] sm:$0xff] %vm1037, %v2227
  %2305 = vst.msk [vmem:[%s4 + $0x198] sm:$0xff] %vm1037, %v2229
  %2306 = vst.msk [vmem:[%s4 + $0x1a0] sm:$0xff] %vm1037, %v2231
  %2307 = vst.msk [vmem:[%s4 + $0x1a8] sm:$0xff] %vm1037, %v2233
  %2308 = vst.msk [vmem:[%s4 + $0x1b0] sm:$0xff] %vm1037, %v2235
  %2309 = vst.msk [vmem:[%s4 + $0x1b8] sm:$0xff] %vm1037, %v2237
  %2310 = vst.msk [vmem:[%s4 + $0x1c0] sm:$0xff] %vm1037, %v2239
  %2311 = vst.msk [vmem:[%s4 + $0x1c8] sm:$0xff] %vm1037, %v2241
  %2312 = vst.msk [vmem:[%s4 + $0x1d0] sm:$0xff] %vm1037, %v2243
  %2313 = vst.msk [vmem:[%s4 + $0x1d8] sm:$0xff] %vm1037, %v2245
  %2314 = vst.msk [vmem:[%s4 + $0x1e0] sm:$0xff] %vm1037, %v2247
  %2315 = vst.msk [vmem:[%s4 + $0x1e8] sm:$0xff] %vm1037, %v2249
  %2316 = vst.msk [vmem:[%s4 + $0x1f0] sm:$0xff] %vm1037, %v2251
  %2317 = vst.msk [vmem:[%s4 + $0x1f8] sm:$0xff] %vm1037, %v2253
  // Predicated region
  $region18: #{tpu_custom_call.1} parent=0 // pred_check
    _
  $region19: #{tpu_custom_call.1} parent=0 // pred_check_branch
    %2319 = sbr.rel (0) target = $region21
  $region20: #{tpu_custom_call.1} parent=0 // pred_region
    _
  $region21: #{tpu_custom_call.1} parent=0 // pred_fallthru
    _
  // Predicated region
  $region22: #{tpu_custom_call.1} parent=0 // pred_check
    _
  $region23: #{tpu_custom_call.1} parent=0 // pred_check_branch
    %2321 = sbr.rel (0) target = $region25
  $region24: #{tpu_custom_call.1} parent=0 // pred_region
    _
  $region25: #{tpu_custom_call.1} parent=0 // pred_fallthru
    _

</llo_original>
